<compile_context>
chip_gen: v5e
topology: v5e:2x2
jax: 0.10.0
libtpu: 0.0.40
codegen_flags: <defaults>
</compile_context>

<pallas_src>
import functools

import jax
import jax.numpy as jnp
from jax import lax
from jax.experimental import pallas as pl
from jax.experimental.pallas import tpu as pltpu

EPS_BN = 1e-5
EPS_NORM = 1e-12          # F.normalize eps
VMEM_LIMIT = 64 * 1024 * 1024   # safe on v5e/v6e (128 MiB) and v7x (64 MiB physical)


# --------------------------------------------------------------------------
# Fused 2-layer MLP: Linear(bias=False) -> BN(train) -> ReLU -> Linear [-> BN]
# Grid: (output tiles ["parallel"], hidden tiles ["arbitrary" reduction]).
# BN1d statistics are per-feature over the batch, so per-hidden-tile / per-output
# -tile statistics are exact.  Output accumulates in a VMEM scratch; final BN in
# pl.when(last hidden tile).  MXU operands are bf16, accumulation f32.
# --------------------------------------------------------------------------
def mlp2_kernel(x_ref, w1_ref, w2_ref, o_ref, acc_ref, *, last_bn):
    j = pl.program_id(1)

    @pl.when(j == 0)
    def _():
        acc_ref[...] = jnp.zeros_like(acc_ref)

    x = x_ref[...].astype(jnp.bfloat16)
    w1 = w1_ref[...].astype(jnp.bfloat16)
    h = jnp.dot(x, w1, preferred_element_type=jnp.float32)

    # BatchNorm1d (train mode, gamma=1, beta=0, biased variance) + ReLU.
    # One-pass stats: E[h^2] - mean^2 (clamped against f32 cancellation).
    mean = jnp.mean(h, axis=0, keepdims=True)
    msq = jnp.mean(h * h, axis=0, keepdims=True)
    var = jnp.maximum(msq - mean * mean, 0.0)
    h = jnp.maximum((h - mean) * lax.rsqrt(var + EPS_BN), 0.0)

    acc_ref[...] += jnp.dot(h.astype(jnp.bfloat16), w2_ref[...].astype(jnp.bfloat16),
                            preferred_element_type=jnp.float32)

    @pl.when(j == pl.num_programs(1) - 1)
    def _():
        z = acc_ref[...]
        if last_bn:  # BatchNorm1d(affine=False), train mode
            m2 = jnp.mean(z, axis=0, keepdims=True)
            s2 = jnp.mean(z * z, axis=0, keepdims=True)
            v2 = jnp.maximum(s2 - m2 * m2, 0.0)
            z = (z - m2) * lax.rsqrt(v2 + EPS_BN)
        o_ref[...] = z


def mlp2_apply(x, w1, w2, *, last_bn, block_hidden=1024, block_out=None):
    # block_hidden: sweep 1024-2048 on v5e/v6e, 512-1024 on v7x (64 MiB VMEM).
    # block_out (v7x): set to d_out // 2 (multiple of 128) to give the second
    # TensorCore an independent "parallel" tile; hidden h is recomputed per tile.
    n, d_in = x.shape
    d_hidden, d_out = w1.shape[1], w2.shape[1]
    bj = block_hidden if (block_hidden < d_hidden and d_hidden % block_hidden == 0) else d_hidden
    bo = d_out
    if block_out is not None and block_out < d_out and d_out % block_out == 0:
        bo = block_out
    grid = (d_out // bo, d_hidden // bj)
    # TODO(synk): single-buffer the invariant x block (pipeline_mode=pl.Buffered(1))
    # to halve its VMEM footprint at production batch sizes.
    return pl.pallas_call(
        functools.partial(mlp2_kernel, last_bn=last_bn),
        out_shape=jax.ShapeDtypeStruct((n, d_out), jnp.float32),
        grid=grid,
        in_specs=[
            pl.BlockSpec((n, d_in), lambda o, j: (0, 0)),   # full batch resident (BN over axis 0)
            pl.BlockSpec((d_in, bj), lambda o, j: (0, j)),  # hidden tile of W1
            pl.BlockSpec((bj, bo), lambda o, j: (j, o)),    # matching tile of W2
        ],
        out_specs=pl.BlockSpec((n, bo), lambda o, j: (0, o)),
        scratch_shapes=[pltpu.VMEM((n, bo), jnp.float32)],
        compiler_params=pltpu.CompilerParams(
            dimension_semantics=("parallel", "arbitrary"),
            vmem_limit_bytes=VMEM_LIMIT),
    )(x, w1, w2)


# --------------------------------------------------------------------------
# Momentum EMA:  param_m = param_m * m + param_b * (1 - m)
# Per-parameter, row-tiled, aliased in place -> pure pipelined HBM streaming.
# --------------------------------------------------------------------------
def ema_kernel(b_ref, m_ref, o_ref, *, m):
    o_ref[...] = m_ref[...] * m + b_ref[...] * (1.0 - m)


def momentum_update_all(params_base, params_momentum, m, *, block_rows=1024):
    out = {}
    for name in sorted(params_momentum.keys()):
        pb, pm = params_base[name], params_momentum[name]
        rows, cols = pm.shape
        br = block_rows if (block_rows < rows and rows % block_rows == 0) else rows
        out[name] = pl.pallas_call(
            functools.partial(ema_kernel, m=float(m)),
            out_shape=jax.ShapeDtypeStruct(pm.shape, pm.dtype),
            grid=(rows // br,),
            in_specs=[pl.BlockSpec((br, cols), lambda i: (i, 0)),
                      pl.BlockSpec((br, cols), lambda i: (i, 0))],
            out_specs=pl.BlockSpec((br, cols), lambda i: (i, 0)),
            input_output_aliases={1: 0},   # update param_m in place
            compiler_params=pltpu.CompilerParams(
                dimension_semantics=("arbitrary",)),
        )(pb, pm)
    return out


# --------------------------------------------------------------------------
# Fused contrastive losses (row-tiled over query tiles):
#   source_loss    = CE(q1 . k2^T / T, labels=arange) * 2T
#   mixloss_source = mean(-log(p[i,i]*lamA1 + p[i,n-1-i]*lamA2)) * 2T, p=softmax(q2m.k1^T/T)
#   mixloss_mix    = same with (lamB1, lamB2)  -- k1_mix == k1, so the logits /
#                    softmax pass is shared between the two mixed losses.
# Keys are L2-normalized ONCE (step 0) into bf16 VMEM scratch; queries normalized
# per tile with 1/T folded in; diag / anti-diag logits come from O(tq*d) row-wise
# products of per-tile key blocks (no (n,n) masks).  Stable log-sum forms.
# --------------------------------------------------------------------------
def _l2_normalize(v):
    nsq = jnp.sum(v * v, axis=1, keepdims=True)
    return v * lax.rsqrt(jnp.maximum(nsq, EPS_NORM * EPS_NORM))  # == v / max(||v||, eps)


def fused_losses_kernel(q1_ref, q2m_ref, k1_ref, k2_ref,
                        k1d_ref, k1a_ref, k2d_ref,
                        la1_ref, la2_ref, lb1_ref, lb2_ref,
                        src_ref, mixs_ref, mixm_ref,
                        k1n_sc, k2n_sc, *, T):
    i = pl.program_id(0)
    n = k1_ref.shape[0]
    inv_T = 1.0 / T

    @pl.when(i == 0)
    def _():
        # Normalize the resident key matrices exactly once; cache bf16 for the MXU.
        k1n_sc[...] = _l2_normalize(k1_ref[...].astype(jnp.float32)).astype(jnp.bfloat16)
        k2n_sc[...] = _l2_normalize(k2_ref[...].astype(jnp.float32)).astype(jnp.bfloat16)
        src_ref[...] = jnp.zeros_like(src_ref)
        mixs_ref[...] = jnp.zeros_like(mixs_ref)
        mixm_ref[...] = jnp.zeros_like(mixm_ref)

    q1 = _l2_normalize(q1_ref[...].astype(jnp.float32)) * inv_T
    q2m = _l2_normalize(q2m_ref[...].astype(jnp.float32)) * inv_T
    k1d = _l2_normalize(k1d_ref[...].astype(jnp.float32))   # k1 rows of this query tile
    k1a = _l2_normalize(k1a_ref[...].astype(jnp.float32))   # k1[n-1-g] rows (pre-flipped)
    k2d = _l2_normalize(k2d_ref[...].astype(jnp.float32))   # k2 rows of this query tile

    dn = (((1,), (1,)), ((), ()))  # contract last dims: q . k^T without transposing k

    # ---- source loss: cross-entropy with labels = arange ----
    logits = lax.dot_general(q1.astype(jnp.bfloat16), k2n_sc[...], dn,
                             preferred_element_type=jnp.float32)
    mx = jnp.max(logits, axis=1, keepdims=True)
    lse = mx + jnp.log(jnp.sum(jnp.exp(logits - mx), axis=1, keepdims=True))
    diag = jnp.sum(q1 * k2d, axis=1, keepdims=True)
    src_ref[...] += jnp.sum(lse - diag, axis=0, keepdims=True)

    # ---- mixed losses: -log(p[i,i]*lam1 + p[i,n-1-i]*lam2), shared logits ----
    lg = lax.dot_general(q2m.astype(jnp.bfloat16), k1n_sc[...], dn,
                         preferred_element_type=jnp.float32)
    mxl = jnp.max(lg, axis=1, keepdims=True)
    lse_m = mxl + jnp.log(jnp.sum(jnp.exp(lg - mxl), axis=1, keepdims=True))
    d_log = jnp.sum(q2m * k1d, axis=1, keepdims=True)   # diagonal logit
    a_log = jnp.sum(q2m * k1a, axis=1, keepdims=True)   # anti-diagonal logit
    mm = jnp.maximum(d_log, a_log)                      # stable two-term log-sum shift
    e_d = jnp.exp(d_log - mm)
    e_a = jnp.exp(a_log - mm)
    base = lse_m - mm
    mixs_ref[...] += jnp.sum(base - jnp.log(la1_ref[...] * e_d + la2_ref[...] * e_a),
                             axis=0, keepdims=True)
    mixm_ref[...] += jnp.sum(base - jnp.log(lb1_ref[...] * e_d + lb2_ref[...] * e_a),
                             axis=0, keepdims=True)

    @pl.when(i == pl.num_programs(0) - 1)
    def _():
        scale = 2.0 * T / n  # mean over rows * 2T
        src_ref[...] *= scale
        mixs_ref[...] *= scale
        mixm_ref[...] *= scale


def fused_losses(q1, q2m, k1, k2, lam_a1, lam_a2, lam_b1, lam_b2, T, *, block_q=256):
    n, d = q1.shape
    tq = block_q if (block_q < n and n % block_q == 0) else n
    k1_flip = jnp.flip(k1, axis=0)            # row g of tile i needs k1[n-1-g] == k1_flip[g]
    col = lambda v: v.reshape(n, 1).astype(jnp.float32)

    tile = pl.BlockSpec((tq, d), lambda i: (i, 0))
    full = pl.BlockSpec((n, d), lambda i: (0, 0))
    lamspec = pl.BlockSpec((tq, 1), lambda i: (i, 0))
    scalar_out = pl.BlockSpec((1, 1), lambda i: (0, 0))

    outs = pl.pallas_call(
        functools.partial(fused_losses_kernel, T=float(T)),
        out_shape=(jax.ShapeDtypeStruct((1, 1), jnp.float32),) * 3,
        grid=(n // tq,),
        in_specs=[tile, tile,                 # q1, q2_mix tiles
                  full, full,                 # k1, k2 resident (matmul rhs)
                  tile, tile, tile,           # k1 diag rows, k1 anti rows, k2 diag rows
                  lamspec, lamspec, lamspec, lamspec],
        out_specs=(scalar_out, scalar_out, scalar_out),
        scratch_shapes=[pltpu.VMEM((n, d), jnp.bfloat16),
                        pltpu.VMEM((n, d), jnp.bfloat16)],
        compiler_params=pltpu.CompilerParams(
            dimension_semantics=("arbitrary",),
            vmem_limit_bytes=VMEM_LIMIT),
    )(q1, q2m, k1, k2, k1, k1_flip, k2,
      col(lam_a1), col(lam_a2), col(lam_b1), col(lam_b2))
    return outs[0][0, 0], outs[1][0, 0], outs[2][0, 0]


# --------------------------------------------------------------------------
# MoCo model glue (parameter setup, encoder / predictor composition)
# --------------------------------------------------------------------------
def init_mlp2(key, d_in, d_hidden, d_out):
    k1, k2 = jax.random.split(key)
    w1 = jax.random.normal(k1, (d_in, d_hidden), jnp.float32) / jnp.sqrt(d_in)
    w2 = jax.random.normal(k2, (d_hidden, d_out), jnp.float32) / jnp.sqrt(d_hidden)
    return {"w1": w1, "w2": w2}


def encoder_apply(params, x_nchw):
    # TODO(synk): `base_encoder` is an injected backbone (e.g. ResNet) in PyTorch;
    # modeled here as global-average-pool (plain JAX glue) + the MoCo projector MLP
    # (Linear(no bias)+BN+ReLU+Linear+BN(affine=False)) as ONE fused Pallas kernel.
    feat = jnp.mean(x_nchw, axis=(2, 3))  # (N, C)
    return mlp2_apply(feat, params["w1"], params["w2"], last_bn=True)


def predictor_apply(params, x):
    # MoCo v3 predictor: last_bn=False
    return mlp2_apply(x, params["w1"], params["w2"], last_bn=False)


def compute_new_lam(lam, H, W):
    """Reproduces datamixing()'s new_lam: 1 - cut_h*cut_w/(H*W),
    cut = int(side*sqrt(1-(0.8*lam+0.1)))."""
    ratio = jnp.sqrt(1.0 - (lam * 0.8 + 0.1))
    cut_h = jnp.floor(H * ratio)
    cut_w = jnp.floor(W * ratio)
    return 1.0 - (cut_h * cut_w) / float(H * W)


def moco_forward(params_base, params_momentum, params_pred, x1, x2, key, *, m, T):
    bz = x1.shape[0]
    H, W = x1.shape[2], x1.shape[3]
    k_lam, k_swap = jax.random.split(key)

    # lam ~ Beta(1,1) == Uniform(0,1); single device -> concat_all_gather is identity.
    lam = jax.random.uniform(k_lam, (bz,), jnp.float32)
    swap = jax.random.uniform(k_swap, ())
    do_swap = swap > 0.5
    # lax.cond (branch selection) instead of two full-tensor selects.
    x1, x2 = lax.cond(do_swap, lambda ab: (ab[1], ab[0]), lambda ab: ab, (x1, x2))

    # datamixing never modifies the pixels (dead branch); only new_lam changes.
    new_lam = compute_new_lam(lam, H, W)  # (bz,)

    # queries through base encoder + predictor (each encoder/predictor = 1 kernel)
    q1 = predictor_apply(params_pred, encoder_apply(params_base, x1))
    q2_mix = predictor_apply(params_pred, encoder_apply(params_base, x2))   # x2_mix == x2

    # momentum update of the momentum encoder (tiled, aliased streaming EMA)
    params_momentum = momentum_update_all(params_base, params_momentum, m)
    k1 = encoder_apply(params_momentum, x1)
    # k1_mix == k1 (x1_mix == x1), so the third momentum-encoder pass is skipped.
    k2 = encoder_apply(params_momentum, x2)

    lam_v = new_lam  # lam = new_lam.squeeze()
    common = (jnp.minimum(lam_v, 1.0 - jnp.flip(lam_v))
              + jnp.minimum(1.0 - lam_v, jnp.flip(lam_v)))

    source_loss, mixloss_source, mixloss_mix = fused_losses(
        q1, q2_mix, k1, k2,
        lam_v, 1.0 - lam_v,
        1.0 / (1.0 + common), common / (1.0 + common), T)

    return source_loss, mixloss_source / 2.0, mixloss_mix / 2.0, params_momentum


# --------------------------------------------------------------------------
if __name__ == "__main__":
    # small shapes: batch=2, channels=4, spatial=16, dim=16, mlp_dim=32
    bz, C, H, W = 2, 4, 16, 16
    dim, mlp_dim = 16, 32
    T = 1.0
    m = 0.99

    key = jax.random.PRNGKey(0)
    k_x1, k_x2, k_enc, k_pred, k_fwd = jax.random.split(key, 5)

    x1 = jax.random.normal(k_x1, (bz, C, H, W), jnp.float32)
    x2 = jax.random.normal(k_x2, (bz, C, H, W), jnp.float32)

    # base encoder projector params; momentum encoder starts as an exact copy.
    params_base = init_mlp2(k_enc, C, mlp_dim, dim)
    params_momentum = {n: v.copy() for n, v in params_base.items()}
    params_pred = init_mlp2(k_pred, dim, mlp_dim, dim)

    fwd = jax.jit(functools.partial(moco_forward, m=float(m), T=float(T)))
    source_loss, mixloss_source, mixloss_mix, _ = fwd(
        params_base, params_momentum, params_pred, x1, x2, k_fwd)

    jax.block_until_ready((source_loss, mixloss_source, mixloss_mix))
    print("KERNEL_OK")
</pallas_src>

<mosaic_0001>
module attributes {stable_mosaic.version = 11 : i64} {
  func.func @ema_kernel(%arg0: i32, %arg1: memref<32x16xf32, #tpu.memory_space<vmem>>, %arg2: memref<32x16xf32, #tpu.memory_space<vmem>>, %arg3: memref<32x16xf32, #tpu.memory_space<vmem>>) attributes {dimension_semantics = [#tpu.dimension_semantics<arbitrary>], iteration_bounds = array<i64: 1>, scalar_prefetch = 0 : i64, scratch_operands = 0 : i64, tpu.core_type = #tpu.core_type<tc>, window_params = [{transform_indices = @transform_0, window_bounds = array<i64: 32, 16>}, {transform_indices = @transform_1, window_bounds = array<i64: 32, 16>}, {transform_indices = @transform_2, window_bounds = array<i64: 32, 16>}]} {
    %c0 = arith.constant 0 : index
    %c0_0 = arith.constant 0 : index
    %0 = vector.load %arg2[%c0, %c0_0] : memref<32x16xf32, #tpu.memory_space<vmem>>, vector<32x16xf32>
    %cst = arith.constant 9.900000e-01 : f32
    %1 = vector.broadcast %cst : f32 to vector<32x16xf32>
    %2 = arith.mulf %0, %1 : vector<32x16xf32>
    %c0_1 = arith.constant 0 : index
    %c0_2 = arith.constant 0 : index
    %3 = vector.load %arg1[%c0_1, %c0_2] : memref<32x16xf32, #tpu.memory_space<vmem>>, vector<32x16xf32>
    %cst_3 = arith.constant 0.00999999977 : f32
    %4 = vector.broadcast %cst_3 : f32 to vector<32x16xf32>
    %5 = arith.mulf %3, %4 : vector<32x16xf32>
    %6 = arith.addf %2, %5 : vector<32x16xf32>
    %c0_4 = arith.constant 0 : index
    %c0_5 = arith.constant 0 : index
    %7 = vector.load %arg3[%c0_4, %c0_5] : memref<32x16xf32, #tpu.memory_space<vmem>>, vector<32x16xf32>
    tpu.vector_store %arg3[%c0_4, %c0_5], %6 {strides = array<i32>} : memref<32x16xf32, #tpu.memory_space<vmem>>, vector<32x16xf32>,
    return
  }
  func.func @transform_0(%arg0: i32) -> (i32, i32) {
    %c0_i32 = arith.constant 0 : i32
    %c0_i32_0 = arith.constant 0 : i32
    return %arg0, %c0_i32 : i32, i32
  }
  func.func @transform_1(%arg0: i32) -> (i32, i32) {
    %c0_i32 = arith.constant 0 : i32
    %c0_i32_0 = arith.constant 0 : i32
    return %arg0, %c0_i32 : i32, i32
  }
  func.func @transform_2(%arg0: i32) -> (i32, i32) {
    %c0_i32 = arith.constant 0 : i32
    %c0_i32_0 = arith.constant 0 : i32
    return %arg0, %c0_i32 : i32, i32
  }
}

module attributes {stable_mosaic.version = 11 : i64} {
  func.func @ema_kernel(%arg0: i32, %arg1: memref<4x32xf32, #tpu.memory_space<vmem>>, %arg2: memref<4x32xf32, #tpu.memory_space<vmem>>, %arg3: memref<4x32xf32, #tpu.memory_space<vmem>>) attributes {dimension_semantics = [#tpu.dimension_semantics<arbitrary>], iteration_bounds = array<i64: 1>, scalar_prefetch = 0 : i64, scratch_operands = 0 : i64, tpu.core_type = #tpu.core_type<tc>, window_params = [{transform_indices = @transform_0, window_bounds = array<i64: 4, 32>}, {transform_indices = @transform_1, window_bounds = array<i64: 4, 32>}, {transform_indices = @transform_2, window_bounds = array<i64: 4, 32>}]} {
    %c0 = arith.constant 0 : index
    %c0_0 = arith.constant 0 : index
    %0 = vector.load %arg2[%c0, %c0_0] : memref<4x32xf32, #tpu.memory_space<vmem>>, vector<4x32xf32>
    %cst = arith.constant 9.900000e-01 : f32
    %1 = vector.broadcast %cst : f32 to vector<4x32xf32>
    %2 = arith.mulf %0, %1 : vector<4x32xf32>
    %c0_1 = arith.constant 0 : index
    %c0_2 = arith.constant 0 : index
    %3 = vector.load %arg1[%c0_1, %c0_2] : memref<4x32xf32, #tpu.memory_space<vmem>>, vector<4x32xf32>
    %cst_3 = arith.constant 0.00999999977 : f32
    %4 = vector.broadcast %cst_3 : f32 to vector<4x32xf32>
    %5 = arith.mulf %3, %4 : vector<4x32xf32>
    %6 = arith.addf %2, %5 : vector<4x32xf32>
    %c0_4 = arith.constant 0 : index
    %c0_5 = arith.constant 0 : index
    %7 = vector.load %arg3[%c0_4, %c0_5] : memref<4x32xf32, #tpu.memory_space<vmem>>, vector<4x32xf32>
    tpu.vector_store %arg3[%c0_4, %c0_5], %6 {strides = array<i32>} : memref<4x32xf32, #tpu.memory_space<vmem>>, vector<4x32xf32>,
    return
  }
  func.func @transform_0(%arg0: i32) -> (i32, i32) {
    %c0_i32 = arith.constant 0 : i32
    %c0_i32_0 = arith.constant 0 : i32
    return %arg0, %c0_i32 : i32, i32
  }
  func.func @transform_1(%arg0: i32) -> (i32, i32) {
    %c0_i32 = arith.constant 0 : i32
    %c0_i32_0 = arith.constant 0 : i32
    return %arg0, %c0_i32 : i32, i32
  }
  func.func @transform_2(%arg0: i32) -> (i32, i32) {
    %c0_i32 = arith.constant 0 : i32
    %c0_i32_0 = arith.constant 0 : i32
    return %arg0, %c0_i32 : i32, i32
  }
}

module attributes {stable_mosaic.version = 11 : i64} {
  func.func @mlp2_kernel(%arg0: i32, %arg1: i32, %arg2: memref<2x4xf32, #tpu.memory_space<vmem>>, %arg3: memref<4x32xf32, #tpu.memory_space<vmem>>, %arg4: memref<32x16xf32, #tpu.memory_space<vmem>>, %arg5: memref<2x16xf32, #tpu.memory_space<vmem>>, %arg6: memref<2x16xf32, #tpu.memory_space<vmem>>) attributes {dimension_semantics = [#tpu.dimension_semantics<parallel>, #tpu.dimension_semantics<arbitrary>], iteration_bounds = array<i64: 1, 1>, scalar_prefetch = 0 : i64, scratch_operands = 1 : i64, tpu.core_type = #tpu.core_type<tc>, window_params = [{pipeline_mode = #tpu.pipeline_mode<synchronous>, transform_indices = @transform_0, window_bounds = array<i64: 2, 4>}, {transform_indices = @transform_1, window_bounds = array<i64: 4, 32>}, {transform_indices = @transform_2, window_bounds = array<i64: 32, 16>}, {transform_indices = @transform_3, window_bounds = array<i64: 2, 16>}]} {
    %c0_i32 = arith.constant 0 : i32
    %0 = arith.cmpi eq, %arg1, %c0_i32 : i32
    %1 = arith.extui %0 : i1 to i32
    %c0_i32_0 = arith.constant 0 : i32
    %2 = arith.cmpi ne, %1, %c0_i32_0 : i32
    scf.if %2 {
      %cst_20 = arith.constant 0.000000e+00 : f32
      %40 = vector.broadcast %cst_20 : f32 to vector<2x16xf32>
      %c0_21 = arith.constant 0 : index
      %c0_22 = arith.constant 0 : index
      %41 = vector.load %arg6[%c0_21, %c0_22] : memref<2x16xf32, #tpu.memory_space<vmem>>, vector<2x16xf32>
      tpu.vector_store %arg6[%c0_21, %c0_22], %40 {strides = array<i32>} : memref<2x16xf32, #tpu.memory_space<vmem>>, vector<2x16xf32>,
    } else {
    }
    %c0 = arith.constant 0 : index
    %c0_1 = arith.constant 0 : index
    %3 = vector.load %arg2[%c0, %c0_1] : memref<2x4xf32, #tpu.memory_space<vmem>>, vector<2x4xf32>
    %4 = arith.truncf %3 : vector<2x4xf32> to vector<2x4xbf16>
    %c0_2 = arith.constant 0 : index
    %c0_3 = arith.constant 0 : index
    %5 = vector.load %arg3[%c0_2, %c0_3] : memref<4x32xf32, #tpu.memory_space<vmem>>, vector<4x32xf32>
    %6 = arith.truncf %5 : vector<4x32xf32> to vector<4x32xbf16>
    %cst = arith.constant dense<0.000000e+00> : vector<2x32xf32>
    %7 = tpu.matmul %4, %6, %cst {dimension_numbers = #tpu.dot_dimension_numbers<[1], [0], [0], [1], [0, 0, 1, 1], [], []>} : vector<2x4xbf16>, vector<4x32xbf16>, vector<2x32xf32> -> vector<2x32xf32>
    %cst_4 = arith.constant dense<0.000000e+00> : vector<32xf32>
    %8 = vector.multi_reduction <add>, %7, %cst_4 [0] : vector<2x32xf32> to vector<32xf32>
    %9 = vector.shape_cast %8 : vector<32xf32> to vector<1x32xf32>
    %cst_5 = arith.constant 2.000000e+00 : f32
    %10 = vector.broadcast %cst_5 : f32 to vector<1x32xf32>
    %11 = arith.divf %9, %10 : vector<1x32xf32>
    %12 = arith.mulf %7, %7 : vector<2x32xf32>
    %cst_6 = arith.constant dense<0.000000e+00> : vector<32xf32>
    %13 = vector.multi_reduction <add>, %12, %cst_6 [0] : vector<2x32xf32> to vector<32xf32>
    %14 = vector.shape_cast %13 : vector<32xf32> to vector<1x32xf32>
    %cst_7 = arith.constant 2.000000e+00 : f32
    %15 = vector.broadcast %cst_7 : f32 to vector<1x32xf32>
    %16 = arith.divf %14, %15 : vector<1x32xf32>
    %17 = arith.mulf %11, %11 : vector<1x32xf32>
    %18 = arith.subf %16, %17 : vector<1x32xf32>
    %cst_8 = arith.constant 0.000000e+00 : f32
    %19 = vector.broadcast %cst_8 : f32 to vector<1x32xf32>
    %20 = arith.maximumf %18, %19 : vector<1x32xf32>
    %21 = vector.broadcast %11 : vector<1x32xf32> to vector<2x32xf32>
    %22 = arith.subf %7, %21 : vector<2x32xf32>
    %cst_9 = arith.constant 9.99999974E-6 : f32
    %23 = vector.broadcast %cst_9 : f32 to vector<1x32xf32>
    %24 = arith.addf %20, %23 : vector<1x32xf32>
    %25 = math.rsqrt %24 : vector<1x32xf32>
    %26 = vector.broadcast %25 : vector<1x32xf32> to vector<2x32xf32>
    %27 = arith.mulf %22, %26 : vector<2x32xf32>
    %cst_10 = arith.constant 0.000000e+00 : f32
    %28 = vector.broadcast %cst_10 : f32 to vector<2x32xf32>
    %29 = arith.maximumf %27, %28 : vector<2x32xf32>
    %c0_11 = arith.constant 0 : index
    %c0_12 = arith.constant 0 : index
    %30 = vector.load %arg6[%c0_11, %c0_12] : memref<2x16xf32, #tpu.memory_space<vmem>>, vector<2x16xf32>
    %31 = arith.truncf %29 : vector<2x32xf32> to vector<2x32xbf16>
    %c0_13 = arith.constant 0 : index
    %c0_14 = arith.constant 0 : index
    %32 = vector.load %arg4[%c0_13, %c0_14] : memref<32x16xf32, #tpu.memory_space<vmem>>, vector<32x16xf32>
    %33 = arith.truncf %32 : vector<32x16xf32> to vector<32x16xbf16>
    %cst_15 = arith.constant dense<0.000000e+00> : vector<2x16xf32>
    %34 = tpu.matmul %31, %33, %cst_15 {dimension_numbers = #tpu.dot_dimension_numbers<[1], [0], [0], [1], [0, 0, 1, 1], [], []>} : vector<2x32xbf16>, vector<32x16xbf16>, vector<2x16xf32> -> vector<2x16xf32>
    %35 = arith.addf %30, %34 : vector<2x16xf32>
    %c0_16 = arith.constant 0 : index
    %c0_17 = arith.constant 0 : index
    %36 = vector.load %arg6[%c0_16, %c0_17] : memref<2x16xf32, #tpu.memory_space<vmem>>, vector<2x16xf32>
    tpu.vector_store %arg6[%c0_16, %c0_17], %35 {strides = array<i32>} : memref<2x16xf32, #tpu.memory_space<vmem>>, vector<2x16xf32>,
    %c0_i32_18 = arith.constant 0 : i32
    %37 = arith.cmpi eq, %arg1, %c0_i32_18 : i32
    %38 = arith.extui %37 : i1 to i32
    %c0_i32_19 = arith.constant 0 : i32
    %39 = arith.cmpi ne, %38, %c0_i32_19 : i32
    scf.if %39 {
      %c0_20 = arith.constant 0 : index
      %c0_21 = arith.constant 0 : index
      %40 = vector.load %arg6[%c0_20, %c0_21] : memref<2x16xf32, #tpu.memory_space<vmem>>, vector<2x16xf32>
      %cst_22 = arith.constant dense<0.000000e+00> : vector<16xf32>
      %41 = vector.multi_reduction <add>, %40, %cst_22 [0] : vector<2x16xf32> to vector<16xf32>
      %42 = vector.shape_cast %41 : vector<16xf32> to vector<1x16xf32>
      %cst_23 = arith.constant 2.000000e+00 : f32
      %43 = vector.broadcast %cst_23 : f32 to vector<1x16xf32>
      %44 = arith.divf %42, %43 : vector<1x16xf32>
      %45 = arith.mulf %40, %40 : vector<2x16xf32>
      %cst_24 = arith.constant dense<0.000000e+00> : vector<16xf32>
      %46 = vector.multi_reduction <add>, %45, %cst_24 [0] : vector<2x16xf32> to vector<16xf32>
      %47 = vector.shape_cast %46 : vector<16xf32> to vector<1x16xf32>
      %cst_25 = arith.constant 2.000000e+00 : f32
      %48 = vector.broadcast %cst_25 : f32 to vector<1x16xf32>
      %49 = arith.divf %47, %48 : vector<1x16xf32>
      %50 = arith.mulf %44, %44 : vector<1x16xf32>
      %51 = arith.subf %49, %50 : vector<1x16xf32>
      %cst_26 = arith.constant 0.000000e+00 : f32
      %52 = vector.broadcast %cst_26 : f32 to vector<1x16xf32>
      %53 = arith.maximumf %51, %52 : vector<1x16xf32>
      %54 = vector.broadcast %44 : vector<1x16xf32> to vector<2x16xf32>
      %55 = arith.subf %40, %54 : vector<2x16xf32>
      %cst_27 = arith.constant 9.99999974E-6 : f32
      %56 = vector.broadcast %cst_27 : f32 to vector<1x16xf32>
      %57 = arith.addf %53, %56 : vector<1x16xf32>
      %58 = math.rsqrt %57 : vector<1x16xf32>
      %59 = vector.broadcast %58 : vector<1x16xf32> to vector<2x16xf32>
      %60 = arith.mulf %55, %59 : vector<2x16xf32>
      %c0_28 = arith.constant 0 : index
      %c0_29 = arith.constant 0 : index
      %61 = vector.load %arg5[%c0_28, %c0_29] : memref<2x16xf32, #tpu.memory_space<vmem>>, vector<2x16xf32>
      tpu.vector_store %arg5[%c0_28, %c0_29], %60 {strides = array<i32>} : memref<2x16xf32, #tpu.memory_space<vmem>>, vector<2x16xf32>,
    } else {
    }
    return
  }
  func.func @transform_0(%arg0: i32, %arg1: i32) -> (i32, i32) {
    %c0_i32 = arith.constant 0 : i32
    %c0_i32_0 = arith.constant 0 : i32
    %c0_i32_1 = arith.constant 0 : i32
    return %c0_i32, %c0_i32_0 : i32, i32
  }
  func.func @transform_1(%arg0: i32, %arg1: i32) -> (i32, i32) {
    %c0_i32 = arith.constant 0 : i32
    %c0_i32_0 = arith.constant 0 : i32
    return %c0_i32, %arg1 : i32, i32
  }
  func.func @transform_2(%arg0: i32, %arg1: i32) -> (i32, i32) {
    %c0_i32 = arith.constant 0 : i32
    return %arg1, %arg0 : i32, i32
  }
  func.func @transform_3(%arg0: i32, %arg1: i32) -> (i32, i32) {
    %c0_i32 = arith.constant 0 : i32
    %c0_i32_0 = arith.constant 0 : i32
    return %c0_i32, %arg0 : i32, i32
  }
}

module attributes {stable_mosaic.version = 11 : i64} {
  func.func @mlp2_kernel(%arg0: i32, %arg1: i32, %arg2: memref<2x16xf32, #tpu.memory_space<vmem>>, %arg3: memref<16x32xf32, #tpu.memory_space<vmem>>, %arg4: memref<32x16xf32, #tpu.memory_space<vmem>>, %arg5: memref<2x16xf32, #tpu.memory_space<vmem>>, %arg6: memref<2x16xf32, #tpu.memory_space<vmem>>) attributes {dimension_semantics = [#tpu.dimension_semantics<parallel>, #tpu.dimension_semantics<arbitrary>], iteration_bounds = array<i64: 1, 1>, scalar_prefetch = 0 : i64, scratch_operands = 1 : i64, tpu.core_type = #tpu.core_type<tc>, window_params = [{pipeline_mode = #tpu.pipeline_mode<synchronous>, transform_indices = @transform_0, window_bounds = array<i64: 2, 16>}, {transform_indices = @transform_1, window_bounds = array<i64: 16, 32>}, {transform_indices = @transform_2, window_bounds = array<i64: 32, 16>}, {transform_indices = @transform_3, window_bounds = array<i64: 2, 16>}]} {
    %c0_i32 = arith.constant 0 : i32
    %0 = arith.cmpi eq, %arg1, %c0_i32 : i32
    %1 = arith.extui %0 : i1 to i32
    %c0_i32_0 = arith.constant 0 : i32
    %2 = arith.cmpi ne, %1, %c0_i32_0 : i32
    scf.if %2 {
      %cst_20 = arith.constant 0.000000e+00 : f32
      %40 = vector.broadcast %cst_20 : f32 to vector<2x16xf32>
      %c0_21 = arith.constant 0 : index
      %c0_22 = arith.constant 0 : index
      %41 = vector.load %arg6[%c0_21, %c0_22] : memref<2x16xf32, #tpu.memory_space<vmem>>, vector<2x16xf32>
      tpu.vector_store %arg6[%c0_21, %c0_22], %40 {strides = array<i32>} : memref<2x16xf32, #tpu.memory_space<vmem>>, vector<2x16xf32>,
    } else {
    }
    %c0 = arith.constant 0 : index
    %c0_1 = arith.constant 0 : index
    %3 = vector.load %arg2[%c0, %c0_1] : memref<2x16xf32, #tpu.memory_space<vmem>>, vector<2x16xf32>
    %4 = arith.truncf %3 : vector<2x16xf32> to vector<2x16xbf16>
    %c0_2 = arith.constant 0 : index
    %c0_3 = arith.constant 0 : index
    %5 = vector.load %arg3[%c0_2, %c0_3] : memref<16x32xf32, #tpu.memory_space<vmem>>, vector<16x32xf32>
    %6 = arith.truncf %5 : vector<16x32xf32> to vector<16x32xbf16>
    %cst = arith.constant dense<0.000000e+00> : vector<2x32xf32>
    %7 = tpu.matmul %4, %6, %cst {dimension_numbers = #tpu.dot_dimension_numbers<[1], [0], [0], [1], [0, 0, 1, 1], [], []>} : vector<2x16xbf16>, vector<16x32xbf16>, vector<2x32xf32> -> vector<2x32xf32>
    %cst_4 = arith.constant dense<0.000000e+00> : vector<32xf32>
    %8 = vector.multi_reduction <add>, %7, %cst_4 [0] : vector<2x32xf32> to vector<32xf32>
    %9 = vector.shape_cast %8 : vector<32xf32> to vector<1x32xf32>
    %cst_5 = arith.constant 2.000000e+00 : f32
    %10 = vector.broadcast %cst_5 : f32 to vector<1x32xf32>
    %11 = arith.divf %9, %10 : vector<1x32xf32>
    %12 = arith.mulf %7, %7 : vector<2x32xf32>
    %cst_6 = arith.constant dense<0.000000e+00> : vector<32xf32>
    %13 = vector.multi_reduction <add>, %12, %cst_6 [0] : vector<2x32xf32> to vector<32xf32>
    %14 = vector.shape_cast %13 : vector<32xf32> to vector<1x32xf32>
    %cst_7 = arith.constant 2.000000e+00 : f32
    %15 = vector.broadcast %cst_7 : f32 to vector<1x32xf32>
    %16 = arith.divf %14, %15 : vector<1x32xf32>
    %17 = arith.mulf %11, %11 : vector<1x32xf32>
    %18 = arith.subf %16, %17 : vector<1x32xf32>
    %cst_8 = arith.constant 0.000000e+00 : f32
    %19 = vector.broadcast %cst_8 : f32 to vector<1x32xf32>
    %20 = arith.maximumf %18, %19 : vector<1x32xf32>
    %21 = vector.broadcast %11 : vector<1x32xf32> to vector<2x32xf32>
    %22 = arith.subf %7, %21 : vector<2x32xf32>
    %cst_9 = arith.constant 9.99999974E-6 : f32
    %23 = vector.broadcast %cst_9 : f32 to vector<1x32xf32>
    %24 = arith.addf %20, %23 : vector<1x32xf32>
    %25 = math.rsqrt %24 : vector<1x32xf32>
    %26 = vector.broadcast %25 : vector<1x32xf32> to vector<2x32xf32>
    %27 = arith.mulf %22, %26 : vector<2x32xf32>
    %cst_10 = arith.constant 0.000000e+00 : f32
    %28 = vector.broadcast %cst_10 : f32 to vector<2x32xf32>
    %29 = arith.maximumf %27, %28 : vector<2x32xf32>
    %c0_11 = arith.constant 0 : index
    %c0_12 = arith.constant 0 : index
    %30 = vector.load %arg6[%c0_11, %c0_12] : memref<2x16xf32, #tpu.memory_space<vmem>>, vector<2x16xf32>
    %31 = arith.truncf %29 : vector<2x32xf32> to vector<2x32xbf16>
    %c0_13 = arith.constant 0 : index
    %c0_14 = arith.constant 0 : index
    %32 = vector.load %arg4[%c0_13, %c0_14] : memref<32x16xf32, #tpu.memory_space<vmem>>, vector<32x16xf32>
    %33 = arith.truncf %32 : vector<32x16xf32> to vector<32x16xbf16>
    %cst_15 = arith.constant dense<0.000000e+00> : vector<2x16xf32>
    %34 = tpu.matmul %31, %33, %cst_15 {dimension_numbers = #tpu.dot_dimension_numbers<[1], [0], [0], [1], [0, 0, 1, 1], [], []>} : vector<2x32xbf16>, vector<32x16xbf16>, vector<2x16xf32> -> vector<2x16xf32>
    %35 = arith.addf %30, %34 : vector<2x16xf32>
    %c0_16 = arith.constant 0 : index
    %c0_17 = arith.constant 0 : index
    %36 = vector.load %arg6[%c0_16, %c0_17] : memref<2x16xf32, #tpu.memory_space<vmem>>, vector<2x16xf32>
    tpu.vector_store %arg6[%c0_16, %c0_17], %35 {strides = array<i32>} : memref<2x16xf32, #tpu.memory_space<vmem>>, vector<2x16xf32>,
    %c0_i32_18 = arith.constant 0 : i32
    %37 = arith.cmpi eq, %arg1, %c0_i32_18 : i32
    %38 = arith.extui %37 : i1 to i32
    %c0_i32_19 = arith.constant 0 : i32
    %39 = arith.cmpi ne, %38, %c0_i32_19 : i32
    scf.if %39 {
      %c0_20 = arith.constant 0 : index
      %c0_21 = arith.constant 0 : index
      %40 = vector.load %arg6[%c0_20, %c0_21] : memref<2x16xf32, #tpu.memory_space<vmem>>, vector<2x16xf32>
      %c0_22 = arith.constant 0 : index
      %c0_23 = arith.constant 0 : index
      %41 = vector.load %arg5[%c0_22, %c0_23] : memref<2x16xf32, #tpu.memory_space<vmem>>, vector<2x16xf32>
      tpu.vector_store %arg5[%c0_22, %c0_23], %40 {strides = array<i32>} : memref<2x16xf32, #tpu.memory_space<vmem>>, vector<2x16xf32>,
    } else {
    }
    return
  }
  func.func @transform_0(%arg0: i32, %arg1: i32) -> (i32, i32) {
    %c0_i32 = arith.constant 0 : i32
    %c0_i32_0 = arith.constant 0 : i32
    %c0_i32_1 = arith.constant 0 : i32
    return %c0_i32, %c0_i32_0 : i32, i32
  }
  func.func @transform_1(%arg0: i32, %arg1: i32) -> (i32, i32) {
    %c0_i32 = arith.constant 0 : i32
    %c0_i32_0 = arith.constant 0 : i32
    return %c0_i32, %arg1 : i32, i32
  }
  func.func @transform_2(%arg0: i32, %arg1: i32) -> (i32, i32) {
    %c0_i32 = arith.constant 0 : i32
    return %arg1, %arg0 : i32, i32
  }
  func.func @transform_3(%arg0: i32, %arg1: i32) -> (i32, i32) {
    %c0_i32 = arith.constant 0 : i32
    %c0_i32_0 = arith.constant 0 : i32
    return %c0_i32, %arg0 : i32, i32
  }
}

module attributes {stable_mosaic.version = 11 : i64} {
  func.func @fused_losses_kernel(%arg0: i32, %arg1: memref<2x16xf32, #tpu.memory_space<vmem>>, %arg2: memref<2x16xf32, #tpu.memory_space<vmem>>, %arg3: memref<2x16xf32, #tpu.memory_space<vmem>>, %arg4: memref<2x16xf32, #tpu.memory_space<vmem>>, %arg5: memref<2x16xf32, #tpu.memory_space<vmem>>, %arg6: memref<2x16xf32, #tpu.memory_space<vmem>>, %arg7: memref<2x16xf32, #tpu.memory_space<vmem>>, %arg8: memref<2x1xf32, #tpu.memory_space<vmem>>, %arg9: memref<2x1xf32, #tpu.memory_space<vmem>>, %arg10: memref<2x1xf32, #tpu.memory_space<vmem>>, %arg11: memref<2x1xf32, #tpu.memory_space<vmem>>, %arg12: memref<1x1xf32, #tpu.memory_space<vmem>>, %arg13: memref<1x1xf32, #tpu.memory_space<vmem>>, %arg14: memref<1x1xf32, #tpu.memory_space<vmem>>, %arg15: memref<2x16xbf16, #tpu.memory_space<vmem>>, %arg16: memref<2x16xbf16, #tpu.memory_space<vmem>>) attributes {dimension_semantics = [#tpu.dimension_semantics<arbitrary>], iteration_bounds = array<i64: 1>, scalar_prefetch = 0 : i64, scratch_operands = 2 : i64, tpu.core_type = #tpu.core_type<tc>, window_params = [{transform_indices = @transform_0, window_bounds = array<i64: 2, 16>}, {transform_indices = @transform_1, window_bounds = array<i64: 2, 16>}, {pipeline_mode = #tpu.pipeline_mode<synchronous>, transform_indices = @transform_2, window_bounds = array<i64: 2, 16>}, {pipeline_mode = #tpu.pipeline_mode<synchronous>, transform_indices = @transform_3, window_bounds = array<i64: 2, 16>}, {transform_indices = @transform_4, window_bounds = array<i64: 2, 16>}, {transform_indices = @transform_5, window_bounds = array<i64: 2, 16>}, {transform_indices = @transform_6, window_bounds = array<i64: 2, 16>}, {transform_indices = @transform_7, window_bounds = array<i64: 2, 1>}, {transform_indices = @transform_8, window_bounds = array<i64: 2, 1>}, {transform_indices = @transform_9, window_bounds = array<i64: 2, 1>}, {transform_indices = @transform_10, window_bounds = array<i64: 2, 1>}, {pipeline_mode = #tpu.pipeline_mode<synchronous>, transform_indices = @transform_11, window_bounds = array<i64: 1, 1>}, {pipeline_mode = #tpu.pipeline_mode<synchronous>, transform_indices = @transform_12, window_bounds = array<i64: 1, 1>}, {pipeline_mode = #tpu.pipeline_mode<synchronous>, transform_indices = @transform_13, window_bounds = array<i64: 1, 1>}]} {
    %c0_i32 = arith.constant 0 : i32
    %0 = arith.cmpi eq, %arg0, %c0_i32 : i32
    %1 = arith.extui %0 : i1 to i32
    %c0_i32_0 = arith.constant 0 : i32
    %2 = arith.cmpi ne, %1, %c0_i32_0 : i32
    scf.if %2 {
      %c0_59 = arith.constant 0 : index
      %c0_60 = arith.constant 0 : index
      %124 = vector.load %arg3[%c0_59, %c0_60] : memref<2x16xf32, #tpu.memory_space<vmem>>, vector<2x16xf32>
      %125 = arith.mulf %124, %124 : vector<2x16xf32>
      %cst_61 = arith.constant dense<0.000000e+00> : vector<2xf32>
      %126 = vector.multi_reduction <add>, %125, %cst_61 [1] : vector<2x16xf32> to vector<2xf32>
      %127 = vector.shape_cast %126 : vector<2xf32> to vector<2x1xf32>
      %cst_62 = arith.constant 1.000000e-24 : f32
      %128 = vector.broadcast %cst_62 : f32 to vector<2x1xf32>
      %129 = arith.maximumf %127, %128 : vector<2x1xf32>
      %130 = math.rsqrt %129 : vector<2x1xf32>
      %131 = vector.broadcast %130 : vector<2x1xf32> to vector<2x16xf32>
      %132 = arith.mulf %124, %131 : vector<2x16xf32>
      %133 = arith.truncf %132 : vector<2x16xf32> to vector<2x16xbf16>
      %c0_63 = arith.constant 0 : index
      %c0_64 = arith.constant 0 : index
      %134 = vector.load %arg15[%c0_63, %c0_64] : memref<2x16xbf16, #tpu.memory_space<vmem>>, vector<2x16xbf16>
      tpu.vector_store %arg15[%c0_63, %c0_64], %133 {strides = array<i32>} : memref<2x16xbf16, #tpu.memory_space<vmem>>, vector<2x16xbf16>,
      %c0_65 = arith.constant 0 : index
      %c0_66 = arith.constant 0 : index
      %135 = vector.load %arg4[%c0_65, %c0_66] : memref<2x16xf32, #tpu.memory_space<vmem>>, vector<2x16xf32>
      %136 = arith.mulf %135, %135 : vector<2x16xf32>
      %cst_67 = arith.constant dense<0.000000e+00> : vector<2xf32>
      %137 = vector.multi_reduction <add>, %136, %cst_67 [1] : vector<2x16xf32> to vector<2xf32>
      %138 = vector.shape_cast %137 : vector<2xf32> to vector<2x1xf32>
      %cst_68 = arith.constant 1.000000e-24 : f32
      %139 = vector.broadcast %cst_68 : f32 to vector<2x1xf32>
      %140 = arith.maximumf %138, %139 : vector<2x1xf32>
      %141 = math.rsqrt %140 : vector<2x1xf32>
      %142 = vector.broadcast %141 : vector<2x1xf32> to vector<2x16xf32>
      %143 = arith.mulf %135, %142 : vector<2x16xf32>
      %144 = arith.truncf %143 : vector<2x16xf32> to vector<2x16xbf16>
      %c0_69 = arith.constant 0 : index
      %c0_70 = arith.constant 0 : index
      %145 = vector.load %arg16[%c0_69, %c0_70] : memref<2x16xbf16, #tpu.memory_space<vmem>>, vector<2x16xbf16>
      tpu.vector_store %arg16[%c0_69, %c0_70], %144 {strides = array<i32>} : memref<2x16xbf16, #tpu.memory_space<vmem>>, vector<2x16xbf16>,
      %cst_71 = arith.constant 0.000000e+00 : f32
      %146 = vector.broadcast %cst_71 : f32 to vector<1x1xf32>
      %c0_72 = arith.constant 0 : index
      %c0_73 = arith.constant 0 : index
      %147 = vector.load %arg12[%c0_72, %c0_73] : memref<1x1xf32, #tpu.memory_space<vmem>>, vector<1x1xf32>
      tpu.vector_store %arg12[%c0_72, %c0_73], %146 {strides = array<i32>} : memref<1x1xf32, #tpu.memory_space<vmem>>, vector<1x1xf32>,
      %cst_74 = arith.constant 0.000000e+00 : f32
      %148 = vector.broadcast %cst_74 : f32 to vector<1x1xf32>
      %c0_75 = arith.constant 0 : index
      %c0_76 = arith.constant 0 : index
      %149 = vector.load %arg13[%c0_75, %c0_76] : memref<1x1xf32, #tpu.memory_space<vmem>>, vector<1x1xf32>
      tpu.vector_store %arg13[%c0_75, %c0_76], %148 {strides = array<i32>} : memref<1x1xf32, #tpu.memory_space<vmem>>, vector<1x1xf32>,
      %cst_77 = arith.constant 0.000000e+00 : f32
      %150 = vector.broadcast %cst_77 : f32 to vector<1x1xf32>
      %c0_78 = arith.constant 0 : index
      %c0_79 = arith.constant 0 : index
      %151 = vector.load %arg14[%c0_78, %c0_79] : memref<1x1xf32, #tpu.memory_space<vmem>>, vector<1x1xf32>
      tpu.vector_store %arg14[%c0_78, %c0_79], %150 {strides = array<i32>} : memref<1x1xf32, #tpu.memory_space<vmem>>, vector<1x1xf32>,
    } else {
    }
    %c0 = arith.constant 0 : index
    %c0_1 = arith.constant 0 : index
    %3 = vector.load %arg1[%c0, %c0_1] : memref<2x16xf32, #tpu.memory_space<vmem>>, vector<2x16xf32>
    %4 = arith.mulf %3, %3 : vector<2x16xf32>
    %cst = arith.constant dense<0.000000e+00> : vector<2xf32>
    %5 = vector.multi_reduction <add>, %4, %cst [1] : vector<2x16xf32> to vector<2xf32>
    %6 = vector.shape_cast %5 : vector<2xf32> to vector<2x1xf32>
    %cst_2 = arith.constant 1.000000e-24 : f32
    %7 = vector.broadcast %cst_2 : f32 to vector<2x1xf32>
    %8 = arith.maximumf %6, %7 : vector<2x1xf32>
    %9 = math.rsqrt %8 : vector<2x1xf32>
    %10 = vector.broadcast %9 : vector<2x1xf32> to vector<2x16xf32>
    %11 = arith.mulf %3, %10 : vector<2x16xf32>
    %cst_3 = arith.constant 1.000000e+00 : f32
    %12 = vector.broadcast %cst_3 : f32 to vector<2x16xf32>
    %13 = arith.mulf %11, %12 : vector<2x16xf32>
    %c0_4 = arith.constant 0 : index
    %c0_5 = arith.constant 0 : index
    %14 = vector.load %arg2[%c0_4, %c0_5] : memref<2x16xf32, #tpu.memory_space<vmem>>, vector<2x16xf32>
    %15 = arith.mulf %14, %14 : vector<2x16xf32>
    %cst_6 = arith.constant dense<0.000000e+00> : vector<2xf32>
    %16 = vector.multi_reduction <add>, %15, %cst_6 [1] : vector<2x16xf32> to vector<2xf32>
    %17 = vector.shape_cast %16 : vector<2xf32> to vector<2x1xf32>
    %cst_7 = arith.constant 1.000000e-24 : f32
    %18 = vector.broadcast %cst_7 : f32 to vector<2x1xf32>
    %19 = arith.maximumf %17, %18 : vector<2x1xf32>
    %20 = math.rsqrt %19 : vector<2x1xf32>
    %21 = vector.broadcast %20 : vector<2x1xf32> to vector<2x16xf32>
    %22 = arith.mulf %14, %21 : vector<2x16xf32>
    %cst_8 = arith.constant 1.000000e+00 : f32
    %23 = vector.broadcast %cst_8 : f32 to vector<2x16xf32>
    %24 = arith.mulf %22, %23 : vector<2x16xf32>
    %c0_9 = arith.constant 0 : index
    %c0_10 = arith.constant 0 : index
    %25 = vector.load %arg5[%c0_9, %c0_10] : memref<2x16xf32, #tpu.memory_space<vmem>>, vector<2x16xf32>
    %26 = arith.mulf %25, %25 : vector<2x16xf32>
    %cst_11 = arith.constant dense<0.000000e+00> : vector<2xf32>
    %27 = vector.multi_reduction <add>, %26, %cst_11 [1] : vector<2x16xf32> to vector<2xf32>
    %28 = vector.shape_cast %27 : vector<2xf32> to vector<2x1xf32>
    %cst_12 = arith.constant 1.000000e-24 : f32
    %29 = vector.broadcast %cst_12 : f32 to vector<2x1xf32>
    %30 = arith.maximumf %28, %29 : vector<2x1xf32>
    %31 = math.rsqrt %30 : vector<2x1xf32>
    %32 = vector.broadcast %31 : vector<2x1xf32> to vector<2x16xf32>
    %33 = arith.mulf %25, %32 : vector<2x16xf32>
    %c0_13 = arith.constant 0 : index
    %c0_14 = arith.constant 0 : index
    %34 = vector.load %arg6[%c0_13, %c0_14] : memref<2x16xf32, #tpu.memory_space<vmem>>, vector<2x16xf32>
    %35 = arith.mulf %34, %34 : vector<2x16xf32>
    %cst_15 = arith.constant dense<0.000000e+00> : vector<2xf32>
    %36 = vector.multi_reduction <add>, %35, %cst_15 [1] : vector<2x16xf32> to vector<2xf32>
    %37 = vector.shape_cast %36 : vector<2xf32> to vector<2x1xf32>
    %cst_16 = arith.constant 1.000000e-24 : f32
    %38 = vector.broadcast %cst_16 : f32 to vector<2x1xf32>
    %39 = arith.maximumf %37, %38 : vector<2x1xf32>
    %40 = math.rsqrt %39 : vector<2x1xf32>
    %41 = vector.broadcast %40 : vector<2x1xf32> to vector<2x16xf32>
    %42 = arith.mulf %34, %41 : vector<2x16xf32>
    %c0_17 = arith.constant 0 : index
    %c0_18 = arith.constant 0 : index
    %43 = vector.load %arg7[%c0_17, %c0_18] : memref<2x16xf32, #tpu.memory_space<vmem>>, vector<2x16xf32>
    %44 = arith.mulf %43, %43 : vector<2x16xf32>
    %cst_19 = arith.constant dense<0.000000e+00> : vector<2xf32>
    %45 = vector.multi_reduction <add>, %44, %cst_19 [1] : vector<2x16xf32> to vector<2xf32>
    %46 = vector.shape_cast %45 : vector<2xf32> to vector<2x1xf32>
    %cst_20 = arith.constant 1.000000e-24 : f32
    %47 = vector.broadcast %cst_20 : f32 to vector<2x1xf32>
    %48 = arith.maximumf %46, %47 : vector<2x1xf32>
    %49 = math.rsqrt %48 : vector<2x1xf32>
    %50 = vector.broadcast %49 : vector<2x1xf32> to vector<2x16xf32>
    %51 = arith.mulf %43, %50 : vector<2x16xf32>
    %52 = arith.truncf %13 : vector<2x16xf32> to vector<2x16xbf16>
    %c0_21 = arith.constant 0 : index
    %c0_22 = arith.constant 0 : index
    %53 = vector.load %arg16[%c0_21, %c0_22] : memref<2x16xbf16, #tpu.memory_space<vmem>>, vector<2x16xbf16>
    %cst_23 = arith.constant dense<0.000000e+00> : vector<2x2xf32>
    %54 = tpu.matmul %52, %53, %cst_23 {dimension_numbers = #tpu.dot_dimension_numbers<[1], [1], [0], [0], [0, 0, 1, 0], [], []>} : vector<2x16xbf16>, vector<2x16xbf16>, vector<2x2xf32> -> vector<2x2xf32>
    %cst_24 = arith.constant dense<0xFF800000> : vector<2xf32>
    %55 = vector.multi_reduction <maximumf>, %54, %cst_24 [1] : vector<2x2xf32> to vector<2xf32>
    %56 = vector.shape_cast %55 : vector<2xf32> to vector<2x1xf32>
    %57 = vector.broadcast %56 : vector<2x1xf32> to vector<2x2xf32>
    %58 = arith.subf %54, %57 : vector<2x2xf32>
    %59 = math.exp %58 : vector<2x2xf32>
    %cst_25 = arith.constant dense<0.000000e+00> : vector<2xf32>
    %60 = vector.multi_reduction <add>, %59, %cst_25 [1] : vector<2x2xf32> to vector<2xf32>
    %61 = vector.shape_cast %60 : vector<2xf32> to vector<2x1xf32>
    %62 = math.log %61 : vector<2x1xf32>
    %63 = arith.addf %56, %62 : vector<2x1xf32>
    %64 = arith.mulf %13, %51 : vector<2x16xf32>
    %cst_26 = arith.constant dense<0.000000e+00> : vector<2xf32>
    %65 = vector.multi_reduction <add>, %64, %cst_26 [1] : vector<2x16xf32> to vector<2xf32>
    %66 = vector.shape_cast %65 : vector<2xf32> to vector<2x1xf32>
    %c0_27 = arith.constant 0 : index
    %c0_28 = arith.constant 0 : index
    %67 = vector.load %arg12[%c0_27, %c0_28] : memref<1x1xf32, #tpu.memory_space<vmem>>, vector<1x1xf32>
    %68 = arith.subf %63, %66 : vector<2x1xf32>
    %cst_29 = arith.constant dense<0.000000e+00> : vector<1xf32>
    %69 = vector.multi_reduction <add>, %68, %cst_29 [0] : vector<2x1xf32> to vector<1xf32>
    %70 = vector.shape_cast %69 : vector<1xf32> to vector<1x1xf32>
    %71 = arith.addf %67, %70 : vector<1x1xf32>
    %c0_30 = arith.constant 0 : index
    %c0_31 = arith.constant 0 : index
    %72 = vector.load %arg12[%c0_30, %c0_31] : memref<1x1xf32, #tpu.memory_space<vmem>>, vector<1x1xf32>
    tpu.vector_store %arg12[%c0_30, %c0_31], %71 {strides = array<i32>} : memref<1x1xf32, #tpu.memory_space<vmem>>, vector<1x1xf32>,
    %73 = arith.truncf %24 : vector<2x16xf32> to vector<2x16xbf16>
    %c0_32 = arith.constant 0 : index
    %c0_33 = arith.constant 0 : index
    %74 = vector.load %arg15[%c0_32, %c0_33] : memref<2x16xbf16, #tpu.memory_space<vmem>>, vector<2x16xbf16>
    %cst_34 = arith.constant dense<0.000000e+00> : vector<2x2xf32>
    %75 = tpu.matmul %73, %74, %cst_34 {dimension_numbers = #tpu.dot_dimension_numbers<[1], [1], [0], [0], [0, 0, 1, 0], [], []>} : vector<2x16xbf16>, vector<2x16xbf16>, vector<2x2xf32> -> vector<2x2xf32>
    %cst_35 = arith.constant dense<0xFF800000> : vector<2xf32>
    %76 = vector.multi_reduction <maximumf>, %75, %cst_35 [1] : vector<2x2xf32> to vector<2xf32>
    %77 = vector.shape_cast %76 : vector<2xf32> to vector<2x1xf32>
    %78 = vector.broadcast %77 : vector<2x1xf32> to vector<2x2xf32>
    %79 = arith.subf %75, %78 : vector<2x2xf32>
    %80 = math.exp %79 : vector<2x2xf32>
    %cst_36 = arith.constant dense<0.000000e+00> : vector<2xf32>
    %81 = vector.multi_reduction <add>, %80, %cst_36 [1] : vector<2x2xf32> to vector<2xf32>
    %82 = vector.shape_cast %81 : vector<2xf32> to vector<2x1xf32>
    %83 = math.log %82 : vector<2x1xf32>
    %84 = arith.addf %77, %83 : vector<2x1xf32>
    %85 = arith.mulf %24, %33 : vector<2x16xf32>
    %cst_37 = arith.constant dense<0.000000e+00> : vector<2xf32>
    %86 = vector.multi_reduction <add>, %85, %cst_37 [1] : vector<2x16xf32> to vector<2xf32>
    %87 = vector.shape_cast %86 : vector<2xf32> to vector<2x1xf32>
    %88 = arith.mulf %24, %42 : vector<2x16xf32>
    %cst_38 = arith.constant dense<0.000000e+00> : vector<2xf32>
    %89 = vector.multi_reduction <add>, %88, %cst_38 [1] : vector<2x16xf32> to vector<2xf32>
    %90 = vector.shape_cast %89 : vector<2xf32> to vector<2x1xf32>
    %91 = arith.maximumf %87, %90 : vector<2x1xf32>
    %92 = arith.subf %87, %91 : vector<2x1xf32>
    %93 = math.exp %92 : vector<2x1xf32>
    %94 = arith.subf %90, %91 : vector<2x1xf32>
    %95 = math.exp %94 : vector<2x1xf32>
    %96 = arith.subf %84, %91 : vector<2x1xf32>
    %c0_39 = arith.constant 0 : index
    %c0_40 = arith.constant 0 : index
    %97 = vector.load %arg13[%c0_39, %c0_40] : memref<1x1xf32, #tpu.memory_space<vmem>>, vector<1x1xf32>
    %c0_41 = arith.constant 0 : index
    %c0_42 = arith.constant 0 : index
    %98 = vector.load %arg8[%c0_41, %c0_42] : memref<2x1xf32, #tpu.memory_space<vmem>>, vector<2x1xf32>
    %99 = arith.mulf %98, %93 : vector<2x1xf32>
    %c0_43 = arith.constant 0 : index
    %c0_44 = arith.constant 0 : index
    %100 = vector.load %arg9[%c0_43, %c0_44] : memref<2x1xf32, #tpu.memory_space<vmem>>, vector<2x1xf32>
    %101 = arith.mulf %100, %95 : vector<2x1xf32>
    %102 = arith.addf %99, %101 : vector<2x1xf32>
    %103 = math.log %102 : vector<2x1xf32>
    %104 = arith.subf %96, %103 : vector<2x1xf32>
    %cst_45 = arith.constant dense<0.000000e+00> : vector<1xf32>
    %105 = vector.multi_reduction <add>, %104, %cst_45 [0] : vector<2x1xf32> to vector<1xf32>
    %106 = vector.shape_cast %105 : vector<1xf32> to vector<1x1xf32>
    %107 = arith.addf %97, %106 : vector<1x1xf32>
    %c0_46 = arith.constant 0 : index
    %c0_47 = arith.constant 0 : index
    %108 = vector.load %arg13[%c0_46, %c0_47] : memref<1x1xf32, #tpu.memory_space<vmem>>, vector<1x1xf32>
    tpu.vector_store %arg13[%c0_46, %c0_47], %107 {strides = array<i32>} : memref<1x1xf32, #tpu.memory_space<vmem>>, vector<1x1xf32>,
    %c0_48 = arith.constant 0 : index
    %c0_49 = arith.constant 0 : index
    %109 = vector.load %arg14[%c0_48, %c0_49] : memref<1x1xf32, #tpu.memory_space<vmem>>, vector<1x1xf32>
    %c0_50 = arith.constant 0 : index
    %c0_51 = arith.constant 0 : index
    %110 = vector.load %arg10[%c0_50, %c0_51] : memref<2x1xf32, #tpu.memory_space<vmem>>, vector<2x1xf32>
    %111 = arith.mulf %110, %93 : vector<2x1xf32>
    %c0_52 = arith.constant 0 : index
    %c0_53 = arith.constant 0 : index
    %112 = vector.load %arg11[%c0_52, %c0_53] : memref<2x1xf32, #tpu.memory_space<vmem>>, vector<2x1xf32>
    %113 = arith.mulf %112, %95 : vector<2x1xf32>
    %114 = arith.addf %111, %113 : vector<2x1xf32>
    %115 = math.log %114 : vector<2x1xf32>
    %116 = arith.subf %96, %115 : vector<2x1xf32>
    %cst_54 = arith.constant dense<0.000000e+00> : vector<1xf32>
    %117 = vector.multi_reduction <add>, %116, %cst_54 [0] : vector<2x1xf32> to vector<1xf32>
    %118 = vector.shape_cast %117 : vector<1xf32> to vector<1x1xf32>
    %119 = arith.addf %109, %118 : vector<1x1xf32>
    %c0_55 = arith.constant 0 : index
    %c0_56 = arith.constant 0 : index
    %120 = vector.load %arg14[%c0_55, %c0_56] : memref<1x1xf32, #tpu.memory_space<vmem>>, vector<1x1xf32>
    tpu.vector_store %arg14[%c0_55, %c0_56], %119 {strides = array<i32>} : memref<1x1xf32, #tpu.memory_space<vmem>>, vector<1x1xf32>,
    %c0_i32_57 = arith.constant 0 : i32
    %121 = arith.cmpi eq, %arg0, %c0_i32_57 : i32
    %122 = arith.extui %121 : i1 to i32
    %c0_i32_58 = arith.constant 0 : i32
    %123 = arith.cmpi ne, %122, %c0_i32_58 : i32
    scf.if %123 {
      %c0_59 = arith.constant 0 : index
      %c0_60 = arith.constant 0 : index
      %124 = vector.load %arg12[%c0_59, %c0_60] : memref<1x1xf32, #tpu.memory_space<vmem>>, vector<1x1xf32>
      %cst_61 = arith.constant 1.000000e+00 : f32
      %125 = vector.broadcast %cst_61 : f32 to vector<1x1xf32>
      %126 = arith.mulf %124, %125 : vector<1x1xf32>
      %c0_62 = arith.constant 0 : index
      %c0_63 = arith.constant 0 : index
      %127 = vector.load %arg12[%c0_62, %c0_63] : memref<1x1xf32, #tpu.memory_space<vmem>>, vector<1x1xf32>
      tpu.vector_store %arg12[%c0_62, %c0_63], %126 {strides = array<i32>} : memref<1x1xf32, #tpu.memory_space<vmem>>, vector<1x1xf32>,
      %c0_64 = arith.constant 0 : index
      %c0_65 = arith.constant 0 : index
      %128 = vector.load %arg13[%c0_64, %c0_65] : memref<1x1xf32, #tpu.memory_space<vmem>>, vector<1x1xf32>
      %cst_66 = arith.constant 1.000000e+00 : f32
      %129 = vector.broadcast %cst_66 : f32 to vector<1x1xf32>
      %130 = arith.mulf %128, %129 : vector<1x1xf32>
      %c0_67 = arith.constant 0 : index
      %c0_68 = arith.constant 0 : index
      %131 = vector.load %arg13[%c0_67, %c0_68] : memref<1x1xf32, #tpu.memory_space<vmem>>, vector<1x1xf32>
      tpu.vector_store %arg13[%c0_67, %c0_68], %130 {strides = array<i32>} : memref<1x1xf32, #tpu.memory_space<vmem>>, vector<1x1xf32>,
      %c0_69 = arith.constant 0 : index
      %c0_70 = arith.constant 0 : index
      %132 = vector.load %arg14[%c0_69, %c0_70] : memref<1x1xf32, #tpu.memory_space<vmem>>, vector<1x1xf32>
      %cst_71 = arith.constant 1.000000e+00 : f32
      %133 = vector.broadcast %cst_71 : f32 to vector<1x1xf32>
      %134 = arith.mulf %132, %133 : vector<1x1xf32>
      %c0_72 = arith.constant 0 : index
      %c0_73 = arith.constant 0 : index
      %135 = vector.load %arg14[%c0_72, %c0_73] : memref<1x1xf32, #tpu.memory_space<vmem>>, vector<1x1xf32>
      tpu.vector_store %arg14[%c0_72, %c0_73], %134 {strides = array<i32>} : memref<1x1xf32, #tpu.memory_space<vmem>>, vector<1x1xf32>,
    } else {
    }
    return
  }
  func.func @transform_0(%arg0: i32) -> (i32, i32) {
    %c0_i32 = arith.constant 0 : i32
    %c0_i32_0 = arith.constant 0 : i32
    return %arg0, %c0_i32 : i32, i32
  }
  func.func @transform_1(%arg0: i32) -> (i32, i32) {
    %c0_i32 = arith.constant 0 : i32
    %c0_i32_0 = arith.constant 0 : i32
    return %arg0, %c0_i32 : i32, i32
  }
  func.func @transform_2(%arg0: i32) -> (i32, i32) {
    %c0_i32 = arith.constant 0 : i32
    %c0_i32_0 = arith.constant 0 : i32
    %c0_i32_1 = arith.constant 0 : i32
    return %c0_i32, %c0_i32_0 : i32, i32
  }
  func.func @transform_3(%arg0: i32) -> (i32, i32) {
    %c0_i32 = arith.constant 0 : i32
    %c0_i32_0 = arith.constant 0 : i32
    %c0_i32_1 = arith.constant 0 : i32
    return %c0_i32, %c0_i32_0 : i32, i32
  }
  func.func @transform_4(%arg0: i32) -> (i32, i32) {
    %c0_i32 = arith.constant 0 : i32
    %c0_i32_0 = arith.constant 0 : i32
    return %arg0, %c0_i32 : i32, i32
  }
  func.func @transform_5(%arg0: i32) -> (i32, i32) {
    %c0_i32 = arith.constant 0 : i32
    %c0_i32_0 = arith.constant 0 : i32
    return %arg0, %c0_i32 : i32, i32
  }
  func.func @transform_6(%arg0: i32) -> (i32, i32) {
    %c0_i32 = arith.constant 0 : i32
    %c0_i32_0 = arith.constant 0 : i32
    return %arg0, %c0_i32 : i32, i32
  }
  func.func @transform_7(%arg0: i32) -> (i32, i32) {
    %c0_i32 = arith.constant 0 : i32
    %c0_i32_0 = arith.constant 0 : i32
    return %arg0, %c0_i32 : i32, i32
  }
  func.func @transform_8(%arg0: i32) -> (i32, i32) {
    %c0_i32 = arith.constant 0 : i32
    %c0_i32_0 = arith.constant 0 : i32
    return %arg0, %c0_i32 : i32, i32
  }
  func.func @transform_9(%arg0: i32) -> (i32, i32) {
    %c0_i32 = arith.constant 0 : i32
    %c0_i32_0 = arith.constant 0 : i32
    return %arg0, %c0_i32 : i32, i32
  }
  func.func @transform_10(%arg0: i32) -> (i32, i32) {
    %c0_i32 = arith.constant 0 : i32
    %c0_i32_0 = arith.constant 0 : i32
    return %arg0, %c0_i32 : i32, i32
  }
  func.func @transform_11(%arg0: i32) -> (i32, i32) {
    %c0_i32 = arith.constant 0 : i32
    %c0_i32_0 = arith.constant 0 : i32
    %c0_i32_1 = arith.constant 0 : i32
    return %c0_i32, %c0_i32_0 : i32, i32
  }
  func.func @transform_12(%arg0: i32) -> (i32, i32) {
    %c0_i32 = arith.constant 0 : i32
    %c0_i32_0 = arith.constant 0 : i32
    %c0_i32_1 = arith.constant 0 : i32
    return %c0_i32, %c0_i32_0 : i32, i32
  }
  func.func @transform_13(%arg0: i32) -> (i32, i32) {
    %c0_i32 = arith.constant 0 : i32
    %c0_i32_0 = arith.constant 0 : i32
    %c0_i32_1 = arith.constant 0 : i32
    return %c0_i32, %c0_i32_0 : i32, i32
  }
}

</mosaic_0001>

<llo_original>
// kernel: moco_forward.23
$region0: #{moco_forward.23}
  #allocation0 [shape = 'u32[]', space=smem, size = 0x4, offset = 0x4, fixed_abs, tag = 'smem constant byte address 0x4 - core index']
  #allocation1 [shape = 'u32[72,128]{1,0:T(1,128)}', space=vmem, size = 0x9000, scoped, tag = 'internal scratch']
  %s0 = inlined_call_operand.vmem [shape: f32[4,32], index: 0, kind: input, shape index: {}]
  %s1 = inlined_call_operand.vmem [shape: f32[4,32], index: 1, kind: input, shape index: {}, may-alias: {1,2}]
  %s2 = inlined_call_operand.vmem [shape: f32[4,32], index: 2, kind: output, shape index: {}, may-alias: {1,2}]
  %s3 = sld [smem:[#allocation0]]
  $region18: #{moco_forward.23} parent=0
    _
  %s5 = ssub.s32 1, %s3
  %s6 = scalar_select 0, %s5, %s3
  // Predicated region
  $region2: #{moco_forward.23} parent=0 // pred_check
    _
  $region3: #{moco_forward.23} parent=0 // pred_check_branch
    %8 = sbr.rel (0) target = $region5
  $region4: #{moco_forward.23} parent=0 // pred_region
    _
  $region5: #{moco_forward.23} parent=0 // pred_fallthru
    _
  // Predicated region
  $region6: #{moco_forward.23} parent=0 // pred_check
    _
  $region7: #{moco_forward.23} parent=0 // pred_check_branch
    %10 = sbr.rel (0) target = $region9
  $region8: #{moco_forward.23} parent=0 // pred_region
    _
  $region9: #{moco_forward.23} parent=0 // pred_fallthru
    _
  %v11 = vld [vmem:[%s1] sm:$0xf]
  %v12 = vmul.f32 %v11, 0.99
  %v13 = vld [vmem:[%s0] sm:$0xf]
  %v14 = vmul.f32 %v13, 0.01
  %v15 = vadd.f32 %v12, %v14
  %vm16 = vcmask 257024
  %17 = vst.msk [vmem:[%s2] sm:$0xf] %vm16, %v15
  // Predicated region
  $region10: #{moco_forward.23} parent=0 // pred_check
    _
  $region11: #{moco_forward.23} parent=0 // pred_check_branch
    %19 = sbr.rel (0) target = $region13
  $region12: #{moco_forward.23} parent=0 // pred_region
    _
  $region13: #{moco_forward.23} parent=0 // pred_fallthru
    _
  // Predicated region
  $region14: #{moco_forward.23} parent=0 // pred_check
    _
  $region15: #{moco_forward.23} parent=0 // pred_check_branch
    %21 = sbr.rel (0) target = $region17
  $region16: #{moco_forward.23} parent=0 // pred_region
    _
  $region17: #{moco_forward.23} parent=0 // pred_fallthru
    _

// kernel: moco_forward.24
$region0: #{moco_forward.24}
  #allocation0 [shape = 'u32[]', space=smem, size = 0x4, offset = 0x4, fixed_abs, tag = 'smem constant byte address 0x4 - core index']
  #allocation1 [shape = 'u32[72,128]{1,0:T(1,128)}', space=vmem, size = 0x9000, scoped, tag = 'internal scratch']
  %s0 = inlined_call_operand.vmem [shape: f32[32,16], index: 0, kind: input, shape index: {}]
  %s1 = inlined_call_operand.vmem [shape: f32[32,16], index: 1, kind: input, shape index: {}, may-alias: {1,2}]
  %s2 = inlined_call_operand.vmem [shape: f32[32,16], index: 2, kind: output, shape index: {}, may-alias: {1,2}]
  %s3 = sld [smem:[#allocation0]]
  $region18: #{moco_forward.24} parent=0
    _
  %s5 = ssub.s32 1, %s3
  %s6 = scalar_select 0, %s5, %s3
  // Predicated region
  $region2: #{moco_forward.24} parent=0 // pred_check
    _
  $region3: #{moco_forward.24} parent=0 // pred_check_branch
    %8 = sbr.rel (0) target = $region5
  $region4: #{moco_forward.24} parent=0 // pred_region
    _
  $region5: #{moco_forward.24} parent=0 // pred_fallthru
    _
  // Predicated region
  $region6: #{moco_forward.24} parent=0 // pred_check
    _
  $region7: #{moco_forward.24} parent=0 // pred_check_branch
    %10 = sbr.rel (0) target = $region9
  $region8: #{moco_forward.24} parent=0 // pred_region
    _
  $region9: #{moco_forward.24} parent=0 // pred_fallthru
    _
  %v11 = vld [vmem:[%s1] sm:$0xff]
  %v12 = vld [vmem:[%s1 + $0x8] sm:$0xff]
  %v13 = vld [vmem:[%s1 + $0x10] sm:$0xff]
  %v14 = vld [vmem:[%s1 + $0x18] sm:$0xff]
  %v15 = vmul.f32 %v11, 0.99
  %v16 = vmul.f32 %v12, 0.99
  %v17 = vmul.f32 %v13, 0.99
  %v18 = vmul.f32 %v14, 0.99
  %v19 = vld [vmem:[%s0] sm:$0xff]
  %v20 = vld [vmem:[%s0 + $0x8] sm:$0xff]
  %v21 = vld [vmem:[%s0 + $0x10] sm:$0xff]
  %v22 = vld [vmem:[%s0 + $0x18] sm:$0xff]
  %v23 = vmul.f32 %v19, 0.01
  %v24 = vmul.f32 %v20, 0.01
  %v25 = vmul.f32 %v21, 0.01
  %v26 = vmul.f32 %v22, 0.01
  %v27 = vadd.f32 %v15, %v23
  %v28 = vadd.f32 %v16, %v24
  %v29 = vadd.f32 %v17, %v25
  %v30 = vadd.f32 %v18, %v26
  %vm31 = vcmask 130048
  %32 = vst.msk [vmem:[%s2] sm:$0xff] %vm31, %v27
  %33 = vst.msk [vmem:[%s2 + $0x8] sm:$0xff] %vm31, %v28
  %34 = vst.msk [vmem:[%s2 + $0x10] sm:$0xff] %vm31, %v29
  %35 = vst.msk [vmem:[%s2 + $0x18] sm:$0xff] %vm31, %v30
  // Predicated region
  $region10: #{moco_forward.24} parent=0 // pred_check
    _
  $region11: #{moco_forward.24} parent=0 // pred_check_branch
    %37 = sbr.rel (0) target = $region13
  $region12: #{moco_forward.24} parent=0 // pred_region
    _
  $region13: #{moco_forward.24} parent=0 // pred_fallthru
    _
  // Predicated region
  $region14: #{moco_forward.24} parent=0 // pred_check
    _
  $region15: #{moco_forward.24} parent=0 // pred_check_branch
    %39 = sbr.rel (0) target = $region17
  $region16: #{moco_forward.24} parent=0 // pred_region
    _
  $region17: #{moco_forward.24} parent=0 // pred_fallthru
    _

// kernel: reverse.1
$region0: #{reverse.1}
  %s0 = inlined_call_operand.vmem [shape: f32[2], index: 0, kind: input, shape index: {}]
  %s1 = inlined_call_operand.vmem [shape: f32[2], index: 1, kind: output, shape index: {}]
  %v2 = vlaneseq
  %v3 = vsub.s32 1, %v2
  %4 = vset.pattern.permute.xlu0 %v3
  $region1: #{reverse.1} parent=0
    #allocation0 [shape = 'u8[8192]{0}', space=vmem, size = 0x2000, scoped, tag = 'operand span for operand 0']
    #allocation1 [shape = 'u8[1024]{0}', space=vmem, size = 0x400, scoped, tag = 'packed  for operand 0']
    #allocation2 [shape = 'u8[4096]{0}', space=vmem, size = 0x1000, scoped, tag = 'operand span for operand 1']
    #allocation3 [shape = 'u8[512]{0}', space=vmem, size = 0x400, scoped, tag = 'packed  for operand 1']
    %s5 = scalar_lea.vmem [#allocation1], 1
    // Predicated region
    $region2: #{reverse.1} parent=1 // pred_check
      _
    $region3: #{reverse.1} parent=1 // pred_check_branch
      %7 = sbr.rel (0) target = $region5
    $region4: #{reverse.1} parent=1 // pred_region
      // Predicated region
      $region6: #{reverse.1} parent=4 // pred_check
        _
      $region7: #{reverse.1} parent=4 // pred_check_branch
        %9 = sbr.rel target = $region9
      $region8: #{reverse.1} parent=4 // pred_region
        // Predicated region
        $region21: #{reverse.1} parent=8 // pred_check
          _
        $region22: #{reverse.1} parent=8 // pred_check_branch
          %25 = sbr.rel (0) target = $region24
        $region23: #{reverse.1} parent=8 // pred_region
          %s27 = ssub.s32 2, 1
          loop: start=0, step=1, limit=1
          $region25: #{reverse.1} parent=23 // loop_pre_header
            _
          $region26: #{reverse.1} parent=23 // loop_header
            %s29 = sphi 0, %s33
            %p30 = scmp.ge.s32.totalorder %s29, 1
            %s34 = sphi %s0, %s0
            %s35 = sphi %s5, %s5
          $region27: #{reverse.1} parent=23 // loop_header_branch
            %32 = sbr.rel (%p30) target = $region31
          $region28: #{reverse.1} parent=23 // loop_body
            %v36 = vld [vmem:[%s34] sm:%s27]
            %37 = vst [vmem:[%s35] sm:%s27] %v36
          $region29: #{reverse.1} parent=23 // loop_footer
            %s33 = sadd.s32 1, %s29
          $region30: #{reverse.1} parent=23 // loop_footer_branch
            %28 = sbr.rel target = $region26
          $region31: #{reverse.1} parent=23 // loop_exit
            _
        $region24: #{reverse.1} parent=8 // pred_fallthru
          _
      $region9: #{reverse.1} parent=4 // pred_fallthru
        _
      // Predicated region
      $region10: #{reverse.1} parent=4 // pred_check
        _
      $region11: #{reverse.1} parent=4 // pred_check_branch
        %11 = sbr.rel (0) target = $region13
      $region12: #{reverse.1} parent=4 // pred_region
        %s13 = ssub.s32 2, 1
        loop: start=0, step=1, limit=1
        $region14: #{reverse.1} parent=12 // loop_pre_header
          _
        $region15: #{reverse.1} parent=12 // loop_header
          %s15 = sphi 0, %s19
          %p16 = scmp.ge.s32.totalorder %s15, 1
          %s20 = sphi %s0, %s0
          %s21 = sphi %s5, %s5
        $region16: #{reverse.1} parent=12 // loop_header_branch
          %18 = sbr.rel (%p16) target = $region20
        $region17: #{reverse.1} parent=12 // loop_body
          %v22 = vld [vmem:[%s20] sm:%s13]
          %23 = vst [vmem:[%s21] sm:%s13] %v22
        $region18: #{reverse.1} parent=12 // loop_footer
          %s19 = sadd.s32 1, %s15
        $region19: #{reverse.1} parent=12 // loop_footer_branch
          %14 = sbr.rel target = $region15
        $region20: #{reverse.1} parent=12 // loop_exit
          _
      $region13: #{reverse.1} parent=4 // pred_fallthru
        _
    $region5: #{reverse.1} parent=1 // pred_fallthru
      _
    %38 = vnop
    %s40 = ssub.s32 2, 1
    %s41 = scalar_lea.vmem [#allocation1], 1
    %v42 = vld [vmem:[%s41] sm:%s40]
    %s43 = scalar_lea.vmem [#allocation0], 8
    %44 = vst [vmem:[%s43] sm:%s40] %v42
    %v45 = vld [vmem:[#allocation1] sm:%s40]
    %46 = vst [vmem:[#allocation0] sm:%s40] %v45
    %s47 = scalar_lea.vmem [#allocation0], 7
    %v48 = vld [vmem:[%s47] ss:$-1 sm:$0xff]
    %v49 = vrot.slane %v48, 7
    %50 = vperm.xlu0 %4, %v49
    %v51 = vpop.permute.xlu0 %50
    %52 = vst [vmem:[#allocation2] sm:$0xff] %v51
    %s53 = scalar_lea.vmem [#allocation0], 8
    %s54 = scalar_lea.vmem %s53, 7 [#allocation0]
    %v55 = vld [vmem:[%s54] ss:$-1 sm:$0xff]
    %v56 = vrot.slane %v55, 7
    %57 = vperm.xlu0 %4, %v56
    %v58 = vpop.permute.xlu0 %57
    %v59 = vlaneseq
    %v60 = vshrl.u32 %v59, 7
    %vm61 = vcmp.lt.s32.totalorder %v60, 1
    %62 = vst.msk [vmem:[#allocation2] sm:$0xff] %vm61, %v58
    %s64 = ssub.s32 2, 1
    %v65 = vld [vmem:[#allocation2] sm:%s64]
    %s67 = ssub.s32 2, 1
    %68 = vst [vmem:[#allocation3] sm:%s67] %v65
    // Predicated region
    $region32: #{reverse.1} parent=1 // pred_check
      _
    $region33: #{reverse.1} parent=1 // pred_check_branch
      %70 = sbr.rel (0) target = $region35
    $region34: #{reverse.1} parent=1 // pred_region
      // Predicated region
      $region36: #{reverse.1} parent=34 // pred_check
        _
      $region37: #{reverse.1} parent=34 // pred_check_branch
        %72 = sbr.rel target = $region39
      $region38: #{reverse.1} parent=34 // pred_region
        // Predicated region
        $region51: #{reverse.1} parent=38 // pred_check
          _
        $region52: #{reverse.1} parent=38 // pred_check_branch
          %88 = sbr.rel (0) target = $region54
        $region53: #{reverse.1} parent=38 // pred_region
          %s90 = ssub.s32 2, 1
          loop: start=0, step=1, limit=1
          $region55: #{reverse.1} parent=53 // loop_pre_header
            _
          $region56: #{reverse.1} parent=53 // loop_header
            %s92 = sphi 0, %s96
            %p93 = scmp.ge.s32.totalorder %s92, 1
            %s97 = sphi [#allocation3], [#allocation3]
            %s98 = sphi %s1, %s1
          $region57: #{reverse.1} parent=53 // loop_header_branch
            %95 = sbr.rel (%p93) target = $region61
          $region58: #{reverse.1} parent=53 // loop_body
            %v99 = vld [vmem:[%s97] sm:%s90]
            %100 = vst [vmem:[%s98] sm:%s90] %v99
          $region59: #{reverse.1} parent=53 // loop_footer
            %s96 = sadd.s32 1, %s92
          $region60: #{reverse.1} parent=53 // loop_footer_branch
            %91 = sbr.rel target = $region56
          $region61: #{reverse.1} parent=53 // loop_exit
            _
        $region54: #{reverse.1} parent=38 // pred_fallthru
          _
      $region39: #{reverse.1} parent=34 // pred_fallthru
        _
      // Predicated region
      $region40: #{reverse.1} parent=34 // pred_check
        _
      $region41: #{reverse.1} parent=34 // pred_check_branch
        %74 = sbr.rel (0) target = $region43
      $region42: #{reverse.1} parent=34 // pred_region
        %s76 = ssub.s32 2, 1
        loop: start=0, step=1, limit=1
        $region44: #{reverse.1} parent=42 // loop_pre_header
          _
        $region45: #{reverse.1} parent=42 // loop_header
          %s78 = sphi 0, %s82
          %p79 = scmp.ge.s32.totalorder %s78, 1
          %s83 = sphi [#allocation3], [#allocation3]
          %s84 = sphi %s1, %s1
        $region46: #{reverse.1} parent=42 // loop_header_branch
          %81 = sbr.rel (%p79) target = $region50
        $region47: #{reverse.1} parent=42 // loop_body
          %v85 = vld [vmem:[%s83] sm:%s76]
          %86 = vst [vmem:[%s84] sm:%s76] %v85
        $region48: #{reverse.1} parent=42 // loop_footer
          %s82 = sadd.s32 1, %s78
        $region49: #{reverse.1} parent=42 // loop_footer_branch
          %77 = sbr.rel target = $region45
        $region50: #{reverse.1} parent=42 // loop_exit
          _
      $region43: #{reverse.1} parent=34 // pred_fallthru
        _
    $region35: #{reverse.1} parent=1 // pred_fallthru
      _
    %101 = vnop

// kernel: moco_forward.26
$region0: #{moco_forward.26}
  #allocation0 [shape = 'u32[]', space=smem, size = 0x4, offset = 0x4, fixed_abs, tag = 'smem constant byte address 0x4 - core index']
  #allocation1 [shape = 'u32[72,128]{1,0:T(1,128)}', space=vmem, size = 0x9000, scoped, tag = 'internal scratch']
  #allocation2 [shape = 'f32[2,16]{1,0:T(2,128)}', space=vmem, size = 0x400, scoped, tag = 'scratch operand']
  %s0 = inlined_call_operand.vmem [shape: f32[2,4], index: 0, kind: input, shape index: {}]
  %s1 = inlined_call_operand.vmem [shape: f32[4,32], index: 1, kind: input, shape index: {}]
  %s2 = inlined_call_operand.vmem [shape: f32[32,16], index: 2, kind: input, shape index: {}]
  %s3 = inlined_call_operand.vmem [shape: f32[2,16], index: 3, kind: output, shape index: {}]
  %s4 = sld [smem:[#allocation0]]
  $region30: #{moco_forward.26} parent=0
    _
  %s6 = ssub.s32 1, %s4
  %s7 = scalar_select 0, %s6, %s4
  // Predicated region
  $region2: #{moco_forward.26} parent=0 // pred_check
    _
  $region3: #{moco_forward.26} parent=0 // pred_check_branch
    %9 = sbr.rel (0) target = $region5
  $region4: #{moco_forward.26} parent=0 // pred_region
    _
  $region5: #{moco_forward.26} parent=0 // pred_fallthru
    _
  // Predicated region
  $region6: #{moco_forward.26} parent=0 // pred_check
    _
  $region7: #{moco_forward.26} parent=0 // pred_check_branch
    %11 = sbr.rel (0) target = $region9
  $region8: #{moco_forward.26} parent=0 // pred_region
    _
  $region9: #{moco_forward.26} parent=0 // pred_fallthru
    _
  // Predicated region
  $region10: #{moco_forward.26} parent=0 // pred_check
    _
  $region11: #{moco_forward.26} parent=0 // pred_check_branch
    %13 = sbr.rel (0) target = $region13
  $region12: #{moco_forward.26} parent=0 // pred_region
    _
  $region13: #{moco_forward.26} parent=0 // pred_fallthru
    _
  %p15 = scmp.eq.s32.totalorder 0, 0
  // Predicated region
  $region14: #{moco_forward.26} parent=0 // pred_check
    %p16 = pneg %p15
  $region15: #{moco_forward.26} parent=0 // pred_check_branch
    %18 = sbr.rel (%p16) target = $region17
  $region16: #{moco_forward.26} parent=0 // pred_region
    %vm19 = vcmask 123904
    %20 = vst.msk [vmem:[#allocation2] sm:$0x3] %vm19, 0.0
  $region17: #{moco_forward.26} parent=0 // pred_fallthru
    _
  %v21 = vld [vmem:[%s0] sm:$0x3]
  %v22 = vpack.c.bf16 %v21, %v21
  %v23 = vld [vmem:[%s1] sm:$0xf]
  %v24 = vpack.c.bf16 %v23, %v23
  %vm25 = vcmask 31744
  %v27 = vsel %vm25, %v22, 0
  %vm29 = vcmask 1041408
  %v31 = vsel %vm29, %v24, 0
  %33 = vmatpush.bf16.msra.mxu0 0
  %34 = vmatpush.bf16.msra.mxu0 0
  %35 = vmatpush.bf16.msra.mxu0 0
  %36 = vmatpush.bf16.msra.mxu0 0
  %37 = vmatpush.bf16.msra.mxu0 0
  %38 = vmatpush.bf16.msra.mxu0 0
  %39 = vmatpush.bf16.msra.mxu0 0
  %40 = vmatpush.bf16.msra.mxu0 %v31
  %41 = vmatmul.bf16.gmra.mxu0 %v27
  %v42 = vpop.f32.mrf.mxu0
  %v43 = vadd.f32 0.0, %v42
  %v44 = vpop.f32.mrf.mxu0
  %45 = vdwg.mxu0
  %vm46 = vcmask 254976
  %v47 = vsel %vm46, %v43, 0.0
  %v48 = vrot.slane %v47, 4
  %v49 = vadd.f32 %v47, %v48
  %v50 = vrot.slane %v49, 2
  %v51 = vadd.f32 %v49, %v50
  %v52 = vrot.slane %v51, 1
  %v53 = vadd.f32 %v51, %v52
  %v54 = vrcp.pop 2.0
  %v55 = vmul.f32 2.0, %v54
  %v56 = vsub.f32 1.0, %v55
  %v57 = vmul.f32 %v54, %v56
  %v58 = vadd.f32 %v54, %v57
  %vm59 = vweird.f32 %v54
  %v60 = vsel %vm59, %v54, %v58
  %v61 = vmul.f32 %v53, %v60
  %v62 = vmul.f32 %v43, %v43
  %v63 = vsel %vm46, %v62, 0.0
  %v64 = vrot.slane %v63, 4
  %v65 = vadd.f32 %v63, %v64
  %v66 = vrot.slane %v65, 2
  %v67 = vadd.f32 %v65, %v66
  %v68 = vrot.slane %v67, 1
  %v69 = vadd.f32 %v67, %v68
  %v70 = vmul.f32 %v69, %v60
  %v71 = vmul.f32 %v61, %v61
  %v72 = vsub.f32 %v70, %v71
  %v73 = vmax.f32 %v72, 0.0
  %v74 = vsub.f32 %v43, %v61
  %v75 = vadd.f32 %v73, 1e-05
  %v76 = vrsqrt.pop %v75
  %v77 = vmul.f32 %v76, %v75
  %v78 = vmul.f32 %v77, %v76
  %v79 = vmul.f32 0.5, %v78
  %v80 = vsub.f32 1.5, %v79
  %v81 = vmul.f32 %v76, %v80
  %vm82 = vweird.f32 %v75
  %vm83 = vweird.f32 %v76
  %vm84 = vmor %vm82, %vm83
  %v85 = vsel %vm84, %v76, %v81
  %v86 = vmul.f32 %v74, %v85
  %v87 = vmax.f32 %v86, 0.0
  %v88 = vld [vmem:[#allocation2] sm:$0x3]
  %v89 = vpack.c.bf16 %v87, %v87
  %v90 = vld [vmem:[%s2] sm:$0xff]
  %v91 = vld [vmem:[%s2 + $0x8] sm:$0xff]
  %v92 = vld [vmem:[%s2 + $0x10] sm:$0xff]
  %v93 = vld [vmem:[%s2 + $0x18] sm:$0xff]
  %v94 = vpack.c.bf16 %v91, %v90
  %v95 = vpack.c.bf16 %v93, %v92
  %vm96 = vcmask 261120
  %v98 = vsel %vm96, %v89, 0
  %100 = vmatpush.bf16.msra.mxu0 0
  %101 = vmatpush.bf16.msra.mxu0 0
  %102 = vmatpush.bf16.msra.mxu0 0
  %103 = vmatpush.bf16.msra.mxu0 0
  %104 = vmatpush.bf16.msra.mxu0 0
  %105 = vmatpush.bf16.msra.mxu0 0
  %106 = vmatpush.bf16.msra.mxu0 %v95
  %107 = vmatpush.bf16.msra.mxu0 %v94
  %108 = vmatmul.bf16.gmra.mxu0 %v98
  %v109 = vpop.f32.mrf.mxu0
  %v110 = vadd.f32 0.0, %v109
  %v111 = vpop.f32.mrf.mxu0
  %112 = vdwg.mxu0
  %v113 = vadd.f32 %v88, %v110
  %vm114 = vcmask 123904
  %115 = vst.msk [vmem:[#allocation2] sm:$0x3] %vm114, %v113
  // Predicated region
  $region18: #{moco_forward.26} parent=0 // pred_check
    %p116 = pneg %p15
  $region19: #{moco_forward.26} parent=0 // pred_check_branch
    %118 = sbr.rel (%p116) target = $region21
  $region20: #{moco_forward.26} parent=0 // pred_region
    %v119 = vld [vmem:[#allocation2] sm:$0x3]
    %v120 = vsel %vm114, %v119, 0.0
    %v121 = vrot.slane %v120, 4
    %v122 = vadd.f32 %v120, %v121
    %v123 = vrot.slane %v122, 2
    %v124 = vadd.f32 %v122, %v123
    %v125 = vrot.slane %v124, 1
    %v126 = vadd.f32 %v124, %v125
    %v127 = vmul.f32 %v126, %v60
    %v128 = vmul.f32 %v119, %v119
    %v129 = vsel %vm114, %v128, 0.0
    %v130 = vrot.slane %v129, 4
    %v131 = vadd.f32 %v129, %v130
    %v132 = vrot.slane %v131, 2
    %v133 = vadd.f32 %v131, %v132
    %v134 = vrot.slane %v133, 1
    %v135 = vadd.f32 %v133, %v134
    %v136 = vmul.f32 %v135, %v60
    %v137 = vmul.f32 %v127, %v127
    %v138 = vsub.f32 %v136, %v137
    %v139 = vmax.f32 %v138, 0.0
    %v140 = vsub.f32 %v119, %v127
    %v141 = vadd.f32 %v139, 1e-05
    %v142 = vrsqrt.pop %v141
    %v143 = vmul.f32 %v142, %v141
    %v144 = vmul.f32 %v143, %v142
    %v145 = vmul.f32 0.5, %v144
    %v146 = vsub.f32 1.5, %v145
    %v147 = vmul.f32 %v142, %v146
    %vm148 = vweird.f32 %v141
    %vm149 = vweird.f32 %v142
    %vm150 = vmor %vm148, %vm149
    %v151 = vsel %vm150, %v142, %v147
    %v152 = vmul.f32 %v140, %v151
    %153 = vst.msk [vmem:[%s3] sm:$0x3] %vm114, %v152
  $region21: #{moco_forward.26} parent=0 // pred_fallthru
    _
  // Predicated region
  $region22: #{moco_forward.26} parent=0 // pred_check
    _
  $region23: #{moco_forward.26} parent=0 // pred_check_branch
    %155 = sbr.rel (0) target = $region25
  $region24: #{moco_forward.26} parent=0 // pred_region
    _
  $region25: #{moco_forward.26} parent=0 // pred_fallthru
    _
  // Predicated region
  $region26: #{moco_forward.26} parent=0 // pred_check
    _
  $region27: #{moco_forward.26} parent=0 // pred_check_branch
    %157 = sbr.rel (0) target = $region29
  $region28: #{moco_forward.26} parent=0 // pred_region
    _
  $region29: #{moco_forward.26} parent=0 // pred_fallthru
    _

// kernel: moco_forward.22
$region0: #{moco_forward.22}
  #allocation0 [shape = 'u32[]', space=smem, size = 0x4, offset = 0x4, fixed_abs, tag = 'smem constant byte address 0x4 - core index']
  #allocation1 [shape = 'u32[72,128]{1,0:T(1,128)}', space=vmem, size = 0x9000, scoped, tag = 'internal scratch']
  #allocation2 [shape = 'f32[2,16]{1,0:T(2,128)}', space=vmem, size = 0x400, scoped, tag = 'scratch operand']
  %s0 = inlined_call_operand.vmem [shape: f32[2,16], index: 0, kind: input, shape index: {}]
  %s1 = inlined_call_operand.vmem [shape: f32[16,32], index: 1, kind: input, shape index: {}]
  %s2 = inlined_call_operand.vmem [shape: f32[32,16], index: 2, kind: input, shape index: {}]
  %s3 = inlined_call_operand.vmem [shape: f32[2,16], index: 3, kind: output, shape index: {}]
  %s4 = sld [smem:[#allocation0]]
  $region30: #{moco_forward.22} parent=0
    _
  %s6 = ssub.s32 1, %s4
  %s7 = scalar_select 0, %s6, %s4
  // Predicated region
  $region2: #{moco_forward.22} parent=0 // pred_check
    _
  $region3: #{moco_forward.22} parent=0 // pred_check_branch
    %9 = sbr.rel (0) target = $region5
  $region4: #{moco_forward.22} parent=0 // pred_region
    _
  $region5: #{moco_forward.22} parent=0 // pred_fallthru
    _
  // Predicated region
  $region6: #{moco_forward.22} parent=0 // pred_check
    _
  $region7: #{moco_forward.22} parent=0 // pred_check_branch
    %11 = sbr.rel (0) target = $region9
  $region8: #{moco_forward.22} parent=0 // pred_region
    _
  $region9: #{moco_forward.22} parent=0 // pred_fallthru
    _
  // Predicated region
  $region10: #{moco_forward.22} parent=0 // pred_check
    _
  $region11: #{moco_forward.22} parent=0 // pred_check_branch
    %13 = sbr.rel (0) target = $region13
  $region12: #{moco_forward.22} parent=0 // pred_region
    _
  $region13: #{moco_forward.22} parent=0 // pred_fallthru
    _
  %p15 = scmp.eq.s32.totalorder 0, 0
  // Predicated region
  $region14: #{moco_forward.22} parent=0 // pred_check
    %p16 = pneg %p15
  $region15: #{moco_forward.22} parent=0 // pred_check_branch
    %18 = sbr.rel (%p16) target = $region17
  $region16: #{moco_forward.22} parent=0 // pred_region
    %vm19 = vcmask 123904
    %20 = vst.msk [vmem:[#allocation2] sm:$0x3] %vm19, 0.0
  $region17: #{moco_forward.22} parent=0 // pred_fallthru
    _
  %v21 = vld [vmem:[%s0] sm:$0x3]
  %v22 = vpack.c.bf16 %v21, %v21
  %v23 = vld [vmem:[%s1] sm:$0xff]
  %v24 = vld [vmem:[%s1 + $0x8] sm:$0xff]
  %v25 = vpack.c.bf16 %v24, %v23
  %vm26 = vcmask 130048
  %v28 = vsel %vm26, %v22, 0
  %30 = vmatpush.bf16.msra.mxu0 0
  %31 = vmatpush.bf16.msra.mxu0 0
  %32 = vmatpush.bf16.msra.mxu0 0
  %33 = vmatpush.bf16.msra.mxu0 0
  %34 = vmatpush.bf16.msra.mxu0 0
  %35 = vmatpush.bf16.msra.mxu0 0
  %36 = vmatpush.bf16.msra.mxu0 0
  %37 = vmatpush.bf16.msra.mxu0 %v25
  %38 = vmatmul.bf16.gmra.mxu0 %v28
  %v39 = vpop.f32.mrf.mxu0
  %v40 = vadd.f32 0.0, %v39
  %v41 = vpop.f32.mrf.mxu0
  %42 = vdwg.mxu0
  %vm43 = vcmask 254976
  %v44 = vsel %vm43, %v40, 0.0
  %v45 = vrot.slane %v44, 4
  %v46 = vadd.f32 %v44, %v45
  %v47 = vrot.slane %v46, 2
  %v48 = vadd.f32 %v46, %v47
  %v49 = vrot.slane %v48, 1
  %v50 = vadd.f32 %v48, %v49
  %v51 = vrcp.pop 2.0
  %v52 = vmul.f32 2.0, %v51
  %v53 = vsub.f32 1.0, %v52
  %v54 = vmul.f32 %v51, %v53
  %v55 = vadd.f32 %v51, %v54
  %vm56 = vweird.f32 %v51
  %v57 = vsel %vm56, %v51, %v55
  %v58 = vmul.f32 %v50, %v57
  %v59 = vmul.f32 %v40, %v40
  %v60 = vsel %vm43, %v59, 0.0
  %v61 = vrot.slane %v60, 4
  %v62 = vadd.f32 %v60, %v61
  %v63 = vrot.slane %v62, 2
  %v64 = vadd.f32 %v62, %v63
  %v65 = vrot.slane %v64, 1
  %v66 = vadd.f32 %v64, %v65
  %v67 = vmul.f32 %v66, %v57
  %v68 = vmul.f32 %v58, %v58
  %v69 = vsub.f32 %v67, %v68
  %v70 = vmax.f32 %v69, 0.0
  %v71 = vsub.f32 %v40, %v58
  %v72 = vadd.f32 %v70, 1e-05
  %v73 = vrsqrt.pop %v72
  %v74 = vmul.f32 %v73, %v72
  %v75 = vmul.f32 %v74, %v73
  %v76 = vmul.f32 0.5, %v75
  %v77 = vsub.f32 1.5, %v76
  %v78 = vmul.f32 %v73, %v77
  %vm79 = vweird.f32 %v72
  %vm80 = vweird.f32 %v73
  %vm81 = vmor %vm79, %vm80
  %v82 = vsel %vm81, %v73, %v78
  %v83 = vmul.f32 %v71, %v82
  %v84 = vmax.f32 %v83, 0.0
  %v85 = vld [vmem:[#allocation2] sm:$0x3]
  %v86 = vpack.c.bf16 %v84, %v84
  %v87 = vld [vmem:[%s2] sm:$0xff]
  %v88 = vld [vmem:[%s2 + $0x8] sm:$0xff]
  %v89 = vld [vmem:[%s2 + $0x10] sm:$0xff]
  %v90 = vld [vmem:[%s2 + $0x18] sm:$0xff]
  %v91 = vpack.c.bf16 %v88, %v87
  %v92 = vpack.c.bf16 %v90, %v89
  %vm93 = vcmask 261120
  %v95 = vsel %vm93, %v86, 0
  %97 = vmatpush.bf16.msra.mxu0 0
  %98 = vmatpush.bf16.msra.mxu0 0
  %99 = vmatpush.bf16.msra.mxu0 0
  %100 = vmatpush.bf16.msra.mxu0 0
  %101 = vmatpush.bf16.msra.mxu0 0
  %102 = vmatpush.bf16.msra.mxu0 0
  %103 = vmatpush.bf16.msra.mxu0 %v92
  %104 = vmatpush.bf16.msra.mxu0 %v91
  %105 = vmatmul.bf16.gmra.mxu0 %v95
  %v106 = vpop.f32.mrf.mxu0
  %v107 = vadd.f32 0.0, %v106
  %v108 = vpop.f32.mrf.mxu0
  %109 = vdwg.mxu0
  %v110 = vadd.f32 %v85, %v107
  %vm111 = vcmask 123904
  %112 = vst.msk [vmem:[#allocation2] sm:$0x3] %vm111, %v110
  // Predicated region
  $region18: #{moco_forward.22} parent=0 // pred_check
    %p113 = pneg %p15
  $region19: #{moco_forward.22} parent=0 // pred_check_branch
    %115 = sbr.rel (%p113) target = $region21
  $region20: #{moco_forward.22} parent=0 // pred_region
    %v116 = vld [vmem:[#allocation2] sm:$0x3]
    %117 = vst.msk [vmem:[%s3] sm:$0x3] %vm111, %v116
  $region21: #{moco_forward.22} parent=0 // pred_fallthru
    _
  // Predicated region
  $region22: #{moco_forward.22} parent=0 // pred_check
    _
  $region23: #{moco_forward.22} parent=0 // pred_check_branch
    %119 = sbr.rel (0) target = $region25
  $region24: #{moco_forward.22} parent=0 // pred_region
    _
  $region25: #{moco_forward.22} parent=0 // pred_fallthru
    _
  // Predicated region
  $region26: #{moco_forward.22} parent=0 // pred_check
    _
  $region27: #{moco_forward.22} parent=0 // pred_check_branch
    %121 = sbr.rel (0) target = $region29
  $region28: #{moco_forward.22} parent=0 // pred_region
    _
  $region29: #{moco_forward.22} parent=0 // pred_fallthru
    _

// kernel: moco_forward.27
$region0: #{moco_forward.27}
  #allocation0 [shape = 'u32[]', space=smem, size = 0x4, offset = 0x4, fixed_abs, tag = 'smem constant byte address 0x4 - core index']
  #allocation1 [shape = 'u32[72,128]{1,0:T(1,128)}', space=vmem, size = 0x9000, scoped, tag = 'internal scratch']
  #allocation2 [shape = 'bf16[2,16]{1,0:T(2,128)(2,1)}', space=vmem, size = 0x200, scoped, tag = 'scratch operand']
  #allocation3 [shape = 'bf16[2,16]{1,0:T(2,128)(2,1)}', space=vmem, size = 0x200, scoped, tag = 'scratch operand']
  %s0 = inlined_call_operand.vmem [shape: f32[2,16], index: 0, kind: input, shape index: {}]
  %s1 = inlined_call_operand.vmem [shape: f32[2,16], index: 1, kind: input, shape index: {}]
  %s2 = inlined_call_operand.vmem [shape: f32[2,16], index: 2, kind: input, shape index: {}, may-alias: {2,4}]
  %s3 = inlined_call_operand.vmem [shape: f32[2,16], index: 3, kind: input, shape index: {}, may-alias: {3,6}]
  %s4 = inlined_call_operand.vmem [shape: f32[2,16], index: 4, kind: input, shape index: {}, may-alias: {2,4}]
  %s5 = inlined_call_operand.vmem [shape: f32[2,16], index: 5, kind: input, shape index: {}]
  %s6 = inlined_call_operand.vmem [shape: f32[2,16], index: 6, kind: input, shape index: {}, may-alias: {3,6}]
  %s7 = inlined_call_operand.vmem [shape: f32[2,1], index: 7, kind: input, shape index: {}]
  %s8 = inlined_call_operand.vmem [shape: f32[2,1], index: 8, kind: input, shape index: {}]
  %s9 = inlined_call_operand.vmem [shape: f32[2,1], index: 9, kind: input, shape index: {}]
  %s10 = inlined_call_operand.vmem [shape: f32[2,1], index: 10, kind: input, shape index: {}]
  %s11 = inlined_call_operand.hbm [shape: f32[1,1], index: 11, kind: output, shape index: {0}]
  %s12 = inlined_call_operand.hbm [shape: f32[1,1], index: 12, kind: output, shape index: {1}]
  %s13 = inlined_call_operand.hbm [shape: f32[1,1], index: 13, kind: output, shape index: {2}]
  %14 = xla_tuple %s11, %s12, %s13
  %s15 = sld [smem:[#allocation0]]
  $region78: #{moco_forward.27} parent=0
    _
  %s17 = ssub.s32 1, %s15
  %s18 = scalar_select 0, %s17, %s15
  $region1: #{moco_forward.27} parent=0
    #allocation4 [shape = 'u8[512]{0}', space=vmem, size = 0x400, scoped, tag = 'output window, operand 0, single buffered']
    #allocation5 [shape = 's32[1]{0}', space=sflag, size = 0x4, scoped, tag = 'scoped memory for moco_forward.27']
    #allocation6 [shape = 'u8[512]{0}', space=vmem, size = 0x400, scoped, tag = 'output window, operand 1, single buffered']
    #allocation7 [shape = 's32[1]{0}', space=sflag, size = 0x4, scoped, tag = 'scoped memory for moco_forward.27']
    #allocation8 [shape = 'u8[512]{0}', space=vmem, size = 0x400, scoped, tag = 'output window, operand 2, single buffered']
    %19 = vsyncpa [#allocation5], 0
    %20 = vsyncpa [#allocation7], 0
    // Predicated region
    $region2: #{moco_forward.27} parent=1 // pred_check
      _
    $region3: #{moco_forward.27} parent=1 // pred_check_branch
      %22 = sbr.rel (0) target = $region5
    $region4: #{moco_forward.27} parent=1 // pred_region
      _
    $region5: #{moco_forward.27} parent=1 // pred_fallthru
      _
    // Predicated region
    $region6: #{moco_forward.27} parent=1 // pred_check
      _
    $region7: #{moco_forward.27} parent=1 // pred_check_branch
      %24 = sbr.rel (0) target = $region9
    $region8: #{moco_forward.27} parent=1 // pred_region
      _
    $region9: #{moco_forward.27} parent=1 // pred_fallthru
      _
    // Predicated region
    $region10: #{moco_forward.27} parent=1 // pred_check
      _
    $region11: #{moco_forward.27} parent=1 // pred_check_branch
      %26 = sbr.rel (0) target = $region13
    $region12: #{moco_forward.27} parent=1 // pred_region
      _
    $region13: #{moco_forward.27} parent=1 // pred_fallthru
      _
    // Predicated region
    $region14: #{moco_forward.27} parent=1 // pred_check
      _
    $region15: #{moco_forward.27} parent=1 // pred_check_branch
      %28 = sbr.rel (0) target = $region17
    $region16: #{moco_forward.27} parent=1 // pred_region
      _
    $region17: #{moco_forward.27} parent=1 // pred_fallthru
      _
    // Predicated region
    $region18: #{moco_forward.27} parent=1 // pred_check
      _
    $region19: #{moco_forward.27} parent=1 // pred_check_branch
      %30 = sbr.rel (0) target = $region21
    $region20: #{moco_forward.27} parent=1 // pred_region
      _
    $region21: #{moco_forward.27} parent=1 // pred_fallthru
      _
    // Predicated region
    $region22: #{moco_forward.27} parent=1 // pred_check
      _
    $region23: #{moco_forward.27} parent=1 // pred_check_branch
      %32 = sbr.rel (0) target = $region25
    $region24: #{moco_forward.27} parent=1 // pred_region
      _
    $region25: #{moco_forward.27} parent=1 // pred_fallthru
      _
    // Predicated region
    $region26: #{moco_forward.27} parent=1 // pred_check
      _
    $region27: #{moco_forward.27} parent=1 // pred_check_branch
      %34 = sbr.rel (0) target = $region29
    $region28: #{moco_forward.27} parent=1 // pred_region
      _
    $region29: #{moco_forward.27} parent=1 // pred_fallthru
      _
    // Predicated region
    $region30: #{moco_forward.27} parent=1 // pred_check
      _
    $region31: #{moco_forward.27} parent=1 // pred_check_branch
      %36 = sbr.rel (0) target = $region33
    $region32: #{moco_forward.27} parent=1 // pred_region
      _
    $region33: #{moco_forward.27} parent=1 // pred_fallthru
      _
    // Predicated region
    $region34: #{moco_forward.27} parent=1 // pred_check
      _
    $region35: #{moco_forward.27} parent=1 // pred_check_branch
      %38 = sbr.rel (0) target = $region37
    $region36: #{moco_forward.27} parent=1 // pred_region
      _
    $region37: #{moco_forward.27} parent=1 // pred_fallthru
      _
    // Predicated region
    $region38: #{moco_forward.27} parent=1 // pred_check
      _
    $region39: #{moco_forward.27} parent=1 // pred_check_branch
      %40 = sbr.rel (0) target = $region41
    $region40: #{moco_forward.27} parent=1 // pred_region
      _
    $region41: #{moco_forward.27} parent=1 // pred_fallthru
      _
    // Predicated region
    $region42: #{moco_forward.27} parent=1 // pred_check
      _
    $region43: #{moco_forward.27} parent=1 // pred_check_branch
      %42 = sbr.rel (0) target = $region45
    $region44: #{moco_forward.27} parent=1 // pred_region
      _
    $region45: #{moco_forward.27} parent=1 // pred_fallthru
      _
    %p44 = scmp.eq.s32.totalorder 0, 0
    // Predicated region
    $region46: #{moco_forward.27} parent=1 // pred_check
      %p45 = pneg %p44
    $region47: #{moco_forward.27} parent=1 // pred_check_branch
      %47 = sbr.rel (%p45) target = $region49
    $region48: #{moco_forward.27} parent=1 // pred_region
      %v48 = vld [vmem:[%s2] sm:$0x3]
      %v49 = vmul.f32 %v48, %v48
      %vm50 = vcmask 123904
      %v51 = vsel %vm50, %v49, 0.0
      %52 = vadd.xlane.f32.xlu0 %v51
      %v53 = vpop.xlane.xlu0 %52
      %v54 = vmax.f32 %v53, 1e-24
      %v55 = vrsqrt.pop %v54
      %v56 = vmul.f32 %v55, %v54
      %v57 = vmul.f32 %v56, %v55
      %v58 = vmul.f32 0.5, %v57
      %v59 = vsub.f32 1.5, %v58
      %v60 = vmul.f32 %v55, %v59
      %vm61 = vweird.f32 %v54
      %vm62 = vweird.f32 %v55
      %vm63 = vmor %vm61, %vm62
      %v64 = vsel %vm63, %v55, %v60
      %v65 = vmul.f32 %v48, %v64
      %v66 = vpack.c.bf16 %v65, %v65
      %vm67 = vcmask 122880
      %68 = vst.msk [vmem:[#allocation2] sm:$0x1] %vm67, %v66
      %v69 = vld [vmem:[%s3] sm:$0x3]
      %v70 = vmul.f32 %v69, %v69
      %v71 = vsel %vm50, %v70, 0.0
      %72 = vadd.xlane.f32.xlu0 %v71
      %v73 = vpop.xlane.xlu0 %72
      %v74 = vmax.f32 %v73, 1e-24
      %v75 = vrsqrt.pop %v74
      %v76 = vmul.f32 %v75, %v74
      %v77 = vmul.f32 %v76, %v75
      %v78 = vmul.f32 0.5, %v77
      %v79 = vsub.f32 1.5, %v78
      %v80 = vmul.f32 %v75, %v79
      %vm81 = vweird.f32 %v74
      %vm82 = vweird.f32 %v75
      %vm83 = vmor %vm81, %vm82
      %v84 = vsel %vm83, %v75, %v80
      %v85 = vmul.f32 %v69, %v84
      %v86 = vpack.c.bf16 %v85, %v85
      %87 = vst.msk [vmem:[#allocation3] sm:$0x1] %vm67, %v86
      %vm88 = vcmask 0
      %89 = vst.msk [vmem:[#allocation4] sm:$0x1] %vm88, 0.0
      %90 = vst.msk [vmem:[#allocation6] sm:$0x1] %vm88, 0.0
      %91 = vst.msk [vmem:[#allocation8] sm:$0x1] %vm88, 0.0
    $region49: #{moco_forward.27} parent=1 // pred_fallthru
      _
    %v92 = vld [vmem:[%s0] sm:$0x3]
    %v93 = vmul.f32 %v92, %v92
    %vm94 = vcmask 123904
    %v95 = vsel %vm94, %v93, 0.0
    %96 = vadd.xlane.f32.xlu0 %v95
    %v97 = vpop.xlane.xlu0 %96
    %v98 = vmax.f32 %v97, 1e-24
    %v99 = vrsqrt.pop %v98
    %v100 = vmul.f32 %v99, %v98
    %v101 = vmul.f32 %v100, %v99
    %v102 = vmul.f32 0.5, %v101
    %v103 = vsub.f32 1.5, %v102
    %v104 = vmul.f32 %v99, %v103
    %vm105 = vweird.f32 %v98
    %vm106 = vweird.f32 %v99
    %vm107 = vmor %vm105, %vm106
    %v108 = vsel %vm107, %v99, %v104
    %v109 = vmul.f32 %v92, %v108
    %v110 = vld [vmem:[%s1] sm:$0x3]
    %v111 = vmul.f32 %v110, %v110
    %v112 = vsel %vm94, %v111, 0.0
    %113 = vadd.xlane.f32.xlu0 %v112
    %v114 = vpop.xlane.xlu0 %113
    %v115 = vmax.f32 %v114, 1e-24
    %v116 = vrsqrt.pop %v115
    %v117 = vmul.f32 %v116, %v115
    %v118 = vmul.f32 %v117, %v116
    %v119 = vmul.f32 0.5, %v118
    %v120 = vsub.f32 1.5, %v119
    %v121 = vmul.f32 %v116, %v120
    %vm122 = vweird.f32 %v115
    %vm123 = vweird.f32 %v116
    %vm124 = vmor %vm122, %vm123
    %v125 = vsel %vm124, %v116, %v121
    %v126 = vmul.f32 %v110, %v125
    %v127 = vld [vmem:[%s4] sm:$0x3]
    %v128 = vmul.f32 %v127, %v127
    %v129 = vsel %vm94, %v128, 0.0
    %130 = vadd.xlane.f32.xlu0 %v129
    %v131 = vpop.xlane.xlu0 %130
    %v132 = vmax.f32 %v131, 1e-24
    %v133 = vrsqrt.pop %v132
    %v134 = vmul.f32 %v133, %v132
    %v135 = vmul.f32 %v134, %v133
    %v136 = vmul.f32 0.5, %v135
    %v137 = vsub.f32 1.5, %v136
    %v138 = vmul.f32 %v133, %v137
    %vm139 = vweird.f32 %v132
    %vm140 = vweird.f32 %v133
    %vm141 = vmor %vm139, %vm140
    %v142 = vsel %vm141, %v133, %v138
    %v143 = vmul.f32 %v127, %v142
    %v144 = vld [vmem:[%s5] sm:$0x3]
    %v145 = vmul.f32 %v144, %v144
    %v146 = vsel %vm94, %v145, 0.0
    %147 = vadd.xlane.f32.xlu0 %v146
    %v148 = vpop.xlane.xlu0 %147
    %v149 = vmax.f32 %v148, 1e-24
    %v150 = vrsqrt.pop %v149
    %v151 = vmul.f32 %v150, %v149
    %v152 = vmul.f32 %v151, %v150
    %v153 = vmul.f32 0.5, %v152
    %v154 = vsub.f32 1.5, %v153
    %v155 = vmul.f32 %v150, %v154
    %vm156 = vweird.f32 %v149
    %vm157 = vweird.f32 %v150
    %vm158 = vmor %vm156, %vm157
    %v159 = vsel %vm158, %v150, %v155
    %v160 = vmul.f32 %v144, %v159
    %v161 = vld [vmem:[%s6] sm:$0x3]
    %v162 = vmul.f32 %v161, %v161
    %v163 = vsel %vm94, %v162, 0.0
    %164 = vadd.xlane.f32.xlu0 %v163
    %v165 = vpop.xlane.xlu0 %164
    %v166 = vmax.f32 %v165, 1e-24
    %v167 = vrsqrt.pop %v166
    %v168 = vmul.f32 %v167, %v166
    %v169 = vmul.f32 %v168, %v167
    %v170 = vmul.f32 0.5, %v169
    %v171 = vsub.f32 1.5, %v170
    %v172 = vmul.f32 %v167, %v171
    %vm173 = vweird.f32 %v166
    %vm174 = vweird.f32 %v167
    %vm175 = vmor %vm173, %vm174
    %v176 = vsel %vm175, %v167, %v172
    %v177 = vmul.f32 %v161, %v176
    %v178 = vpack.c.bf16 %v109, %v109
    %v179 = vld [vmem:[#allocation3] sm:$0x1]
    %vm180 = vcmask 130048
    %v182 = vsel %vm180, %v178, 0
    %v185 = vsel %vm180, %v179, 0
    %187 = vmatpush.bf16.xpose.msra.mxu0 0
    %188 = vmatpush.bf16.xpose.msra.mxu0 0
    %189 = vmatpush.bf16.xpose.msra.mxu0 0
    %190 = vmatpush.bf16.xpose.msra.mxu0 0
    %191 = vmatpush.bf16.xpose.msra.mxu0 0
    %192 = vmatpush.bf16.xpose.msra.mxu0 0
    %193 = vmatpush.bf16.xpose.msra.mxu0 0
    %194 = vmatpush.bf16.xpose.msra.mxu0 %v185
    %195 = vmatmul.bf16.gmra.mxu0 %v182
    %v196 = vpop.f32.mrf.mxu0
    %v197 = vadd.f32 0.0, %v196
    %v198 = vpop.f32.mrf.mxu0
    %199 = vdwg.mxu0
    %vm200 = vcmask 9216
    %v201 = vsel %vm200, %v197, -inf
    %202 = vmax.xlane.f32.xlu0 %v201
    %v203 = vpop.xlane.xlu0 %202
    %v204 = vsub.f32 %v197, %v203
    %v205 = vmul.f32 %v204, 1.442695
    %v206 = vpow.pop %v205
    %v207 = vsel %vm200, %v206, 0.0
    %208 = vadd.xlane.f32.xlu0 %v207
    %v209 = vpop.xlane.xlu0 %208
    %v210 = vlog2.pop %v209
    %v211 = vmul.f32 %v210, 0.6931472
    %v212 = vadd.f32 %v203, %v211
    %v213 = vmul.f32 %v109, %v177
    %v214 = vsel %vm94, %v213, 0.0
    %215 = vadd.xlane.f32.xlu0 %v214
    %v216 = vpop.xlane.xlu0 %215
    %v217 = vld [vmem:[#allocation4] sm:$0x1]
    %v218 = vsub.f32 %v212, %v216
    %vm219 = vcmask 1041408
    %v220 = vsel %vm219, %v218, 0.0
    %v221 = vrot.slane %v220, 4
    %v222 = vadd.f32 %v220, %v221
    %v223 = vrot.slane %v222, 2
    %v224 = vadd.f32 %v222, %v223
    %v225 = vrot.slane %v224, 1
    %v226 = vadd.f32 %v224, %v225
    %v227 = vadd.f32 %v217, %v226
    %vm228 = vcmask 0
    %229 = vst.msk [vmem:[#allocation4] sm:$0x1] %vm228, %v227
    %v230 = vpack.c.bf16 %v126, %v126
    %v231 = vld [vmem:[#allocation2] sm:$0x1]
    %v233 = vsel %vm180, %v230, 0
    %v236 = vsel %vm180, %v231, 0
    %238 = vmatpush.bf16.xpose.msra.mxu0 0
    %239 = vmatpush.bf16.xpose.msra.mxu0 0
    %240 = vmatpush.bf16.xpose.msra.mxu0 0
    %241 = vmatpush.bf16.xpose.msra.mxu0 0
    %242 = vmatpush.bf16.xpose.msra.mxu0 0
    %243 = vmatpush.bf16.xpose.msra.mxu0 0
    %244 = vmatpush.bf16.xpose.msra.mxu0 0
    %245 = vmatpush.bf16.xpose.msra.mxu0 %v236
    %246 = vmatmul.bf16.gmra.mxu0 %v233
    %v247 = vpop.f32.mrf.mxu0
    %v248 = vadd.f32 0.0, %v247
    %v249 = vpop.f32.mrf.mxu0
    %250 = vdwg.mxu0
    %v251 = vsel %vm200, %v248, -inf
    %252 = vmax.xlane.f32.xlu0 %v251
    %v253 = vpop.xlane.xlu0 %252
    %v254 = vsub.f32 %v248, %v253
    %v255 = vmul.f32 %v254, 1.442695
    %v256 = vpow.pop %v255
    %v257 = vsel %vm200, %v256, 0.0
    %258 = vadd.xlane.f32.xlu0 %v257
    %v259 = vpop.xlane.xlu0 %258
    %v260 = vlog2.pop %v259
    %v261 = vmul.f32 %v260, 0.6931472
    %v262 = vadd.f32 %v253, %v261
    %v263 = vmul.f32 %v126, %v143
    %v264 = vsel %vm94, %v263, 0.0
    %265 = vadd.xlane.f32.xlu0 %v264
    %v266 = vpop.xlane.xlu0 %265
    %v267 = vmul.f32 %v126, %v160
    %v268 = vsel %vm94, %v267, 0.0
    %269 = vadd.xlane.f32.xlu0 %v268
    %v270 = vpop.xlane.xlu0 %269
    %v271 = vmax.f32 %v266, %v270
    %v272 = vsub.f32 %v266, %v271
    %v273 = vmul.f32 %v272, 1.442695
    %v274 = vpow.pop %v273
    %v275 = vsub.f32 %v270, %v271
    %v276 = vmul.f32 %v275, 1.442695
    %v277 = vpow.pop %v276
    %v278 = vsub.f32 %v262, %v271
    %v279 = vld [vmem:[#allocation6] sm:$0x1]
    %v280 = vld [vmem:[%s7] sm:$0x3]
    %v281 = vmul.f32 %v280, %v274
    %v282 = vld [vmem:[%s8] sm:$0x3]
    %v283 = vmul.f32 %v282, %v277
    %v284 = vadd.f32 %v281, %v283
    %v285 = vlog2.pop %v284
    %v286 = vmul.f32 %v285, 0.6931472
    %v287 = vsub.f32 %v278, %v286
    %vm288 = vcmask 1024
    %v289 = vsel %vm288, %v287, 0.0
    %v290 = vrot.slane %v289, 4
    %v291 = vadd.f32 %v289, %v290
    %v292 = vrot.slane %v291, 2
    %v293 = vadd.f32 %v291, %v292
    %v294 = vrot.slane %v293, 1
    %v295 = vadd.f32 %v293, %v294
    %v296 = vadd.f32 %v279, %v295
    %297 = vst.msk [vmem:[#allocation6] sm:$0x1] %vm228, %v296
    %v298 = vld [vmem:[#allocation8] sm:$0x1]
    %v299 = vld [vmem:[%s9] sm:$0x3]
    %v300 = vmul.f32 %v299, %v274
    %v301 = vld [vmem:[%s10] sm:$0x3]
    %v302 = vmul.f32 %v301, %v277
    %v303 = vadd.f32 %v300, %v302
    %v304 = vlog2.pop %v303
    %v305 = vmul.f32 %v304, 0.6931472
    %v306 = vsub.f32 %v278, %v305
    %v307 = vsel %vm288, %v306, 0.0
    %v308 = vrot.slane %v307, 4
    %v309 = vadd.f32 %v307, %v308
    %v310 = vrot.slane %v309, 2
    %v311 = vadd.f32 %v309, %v310
    %v312 = vrot.slane %v311, 1
    %v313 = vadd.f32 %v311, %v312
    %v314 = vadd.f32 %v298, %v313
    %315 = vst.msk [vmem:[#allocation8] sm:$0x1] %vm228, %v314
    // Predicated region
    $region50: #{moco_forward.27} parent=1 // pred_check
      %p316 = pneg %p44
    $region51: #{moco_forward.27} parent=1 // pred_check_branch
      %318 = sbr.rel (%p316) target = $region53
    $region52: #{moco_forward.27} parent=1 // pred_region
      %v319 = vld [vmem:[#allocation4] sm:$0x1]
      %320 = vst.msk [vmem:[#allocation4] sm:$0x1] %vm228, %v319
      %v321 = vld [vmem:[#allocation6] sm:$0x1]
      %322 = vst.msk [vmem:[#allocation6] sm:$0x1] %vm228, %v321
      %v323 = vld [vmem:[#allocation8] sm:$0x1]
      %324 = vst.msk [vmem:[#allocation8] sm:$0x1] %vm228, %v323
    $region53: #{moco_forward.27} parent=1 // pred_fallthru
      _
    // Predicated region
    $region54: #{moco_forward.27} parent=1 // pred_check
      _
    $region55: #{moco_forward.27} parent=1 // pred_check_branch
      %326 = sbr.rel (0) target = $region57
    $region56: #{moco_forward.27} parent=1 // pred_region
      %328 = vsyncadd [#allocation5], 0
      %s330 = sshll.u32 [#allocation4], 4
      %s331 = int_to_ptr.vmem [resolvable:$true] %s330
      %s332 = sshll.u32 %s11, 4
      %s333 = int_to_ptr.hbm [resolvable:$true] %s332
      %335 = dma.vmem_to_hbm [thread:$0]  %s331, 16, %s333, [#allocation5]
    $region57: #{moco_forward.27} parent=1 // pred_fallthru
      _
    // Predicated region
    $region58: #{moco_forward.27} parent=1 // pred_check
      _
    $region59: #{moco_forward.27} parent=1 // pred_check_branch
      %337 = sbr.rel (0) target = $region61
    $region60: #{moco_forward.27} parent=1 // pred_region
      %339 = vsyncadd [#allocation7], 0
      %s341 = sshll.u32 [#allocation6], 4
      %s342 = int_to_ptr.vmem [resolvable:$true] %s341
      %s343 = sshll.u32 %s12, 4
      %s344 = int_to_ptr.hbm [resolvable:$true] %s343
      %346 = dma.vmem_to_hbm [thread:$0]  %s342, 16, %s344, [#allocation7]
    $region61: #{moco_forward.27} parent=1 // pred_fallthru
      _
    // Predicated region
    $region62: #{moco_forward.27} parent=1 // pred_check
      _
    $region63: #{moco_forward.27} parent=1 // pred_check_branch
      %348 = sbr.rel (0) target = $region65
    $region64: #{moco_forward.27} parent=1 // pred_region
      %350 = vsyncadd [#allocation7], 0
      %s352 = sshll.u32 [#allocation8], 4
      %s353 = int_to_ptr.vmem [resolvable:$true] %s352
      %s354 = sshll.u32 %s13, 4
      %s355 = int_to_ptr.hbm [resolvable:$true] %s354
      %357 = dma.vmem_to_hbm [thread:$0]  %s353, 16, %s355, [#allocation7]
    $region65: #{moco_forward.27} parent=1 // pred_fallthru
      _
    // Predicated region
    $region66: #{moco_forward.27} parent=1 // pred_check
      _
    $region67: #{moco_forward.27} parent=1 // pred_check_branch
      %359 = sbr.rel (0) target = $region69
    $region68: #{moco_forward.27} parent=1 // pred_region
      %361 = dma.done [#allocation5], 16
    $region69: #{moco_forward.27} parent=1 // pred_fallthru
      _
    // Predicated region
    $region70: #{moco_forward.27} parent=1 // pred_check
      _
    $region71: #{moco_forward.27} parent=1 // pred_check_branch
      %363 = sbr.rel (0) target = $region73
    $region72: #{moco_forward.27} parent=1 // pred_region
      %365 = dma.done [#allocation7], 16
    $region73: #{moco_forward.27} parent=1 // pred_fallthru
      _
    // Predicated region
    $region74: #{moco_forward.27} parent=1 // pred_check
      _
    $region75: #{moco_forward.27} parent=1 // pred_check_branch
      %367 = sbr.rel (0) target = $region77
    $region76: #{moco_forward.27} parent=1 // pred_region
      %369 = dma.done [#allocation7], 16
    $region77: #{moco_forward.27} parent=1 // pred_fallthru
      _
    %370 = vsyncpa [#allocation5], 1
    %371 = vsyncpa [#allocation7], 1

</llo_original>
